<compile_context>
chip_gen: v7x
topology: tpu7x:2x2x1
jax: 0.10.0
libtpu: 0.0.40
codegen_flags: <defaults>
</compile_context>

<pallas_src>
import numpy as np
import jax
import jax.numpy as jnp
from jax.experimental import pallas as pl
from jax.experimental.pallas import tpu as pltpu

_EPS = 1e-12       # F.normalize eps
_BN_EPS = 1e-5     # nn.BatchNorm1d default eps
_MIN_VALUE = -1.0  # Matching(..., min_value=-1) in AttendLocationModule


def _round_up(x, m):
    return (x + m - 1) // m * m


def _attend_location_kernel(lfeats_ref, lang_ref, cls_ref,
                            wloc_ref, wl1_ref, wjj_ref, bias_ref,
                            out_ref):
    f32 = jnp.float32
    eps2 = _EPS * _EPS

    def l2norm(x):
        # 1 / max(||x||, eps) == rsqrt(max(sum(x^2), eps^2))   (EUP rsqrt)
        return x * jax.lax.rsqrt(jnp.maximum(jnp.sum(x * x, axis=-1, keepdims=True), eps2))

    # bias rows: 0=bloc, 1=bv1, 2=bv2, 3=bl1, 4=bl2 (rows 5..7 are zero pad)
    bloc = bias_ref[0:1, :]
    bv1 = bias_ref[1:2, :]
    bv2 = bias_ref[2:3, :]
    bl1 = bias_ref[3:4, :]
    bl2 = bias_ref[4:5, :]

    wv1 = wjj_ref[0]
    wv2 = wjj_ref[1]
    wl2 = wjj_ref[2]

    # ---- visual branch: NormalizeScale -> fc -> (Linear+BN) -> ReLU -> (Linear+BN) -> L2 ----
    lf_n = l2norm(lfeats_ref[0])                                         # scale folded into wloc
    loc = jnp.dot(lf_n, wloc_ref[...], preferred_element_type=f32) + bloc
    h = jnp.maximum(jnp.dot(loc, wv1, preferred_element_type=f32) + bv1, 0.0)
    v = l2norm(jnp.dot(h, wv2, preferred_element_type=f32) + bv2)        # (n_pad, J_pad)

    # ---- language branch: (Linear+BN) -> ReLU -> (Linear+BN) -> L2 ----
    g = jnp.maximum(jnp.dot(lang_ref[0], wl1_ref[...], preferred_element_type=f32) + bl1, 0.0)
    l = l2norm(jnp.dot(g, wl2, preferred_element_type=f32) + bl2)        # (s_pad, J_pad)

    # ---- cosine similarity + mask (cossim * mask; masked entries = min_value) ----
    cos = jnp.dot(l, v.T, preferred_element_type=f32)                    # (s_pad, n_pad)
    mask = cls_ref[0] != -1                                              # (1, n_pad) broadcast
    out_ref[0] = jnp.where(mask, cos, _MIN_VALUE)


def _fold_linear_bn(w, b, gamma, beta, rmean, rvar):
    """y = BN_eval(x @ w.T + b)  ==  x @ wf + bf."""
    s = gamma / jnp.sqrt(rvar + _BN_EPS)
    wf = w.T * s[None, :]
    bf = b * s + (beta - rmean * s)
    return wf.astype(jnp.float32), bf.astype(jnp.float32)


def _pad2(x, rows, cols):
    return jnp.pad(x, ((0, rows - x.shape[0]), (0, cols - x.shape[1])))


def attend_location_forward(lfeats, lang_feats, cls, params):
    bs, n, fdim = lfeats.shape
    num_seq, lang_dim = lang_feats.shape[1], lang_feats.shape[2]
    jemb = params["fc_w"].shape[0]

    n_pad = _round_up(n, 128)        # lane-dense output columns / vis rows
    s_pad = _round_up(num_seq, 8)    # sublane-aligned language rows
    f_pad = _round_up(fdim, 8)
    L_pad = _round_up(lang_dim, 128)
    J_pad = _round_up(jemb, 128)

    # ---- constant folding (eval mode): NormalizeScale into fc, BN into Linear ----
    wloc = params["norm_w"].reshape(-1, 1) * params["fc_w"].T            # (5, J)
    bloc = params["fc_b"].astype(jnp.float32)
    wv1, bv1 = _fold_linear_bn(params["v_w1"], params["v_b1"], params["v_g1"],
                               params["v_be1"], params["v_rm1"], params["v_rv1"])
    wv2, bv2 = _fold_linear_bn(params["v_w2"], params["v_b2"], params["v_g2"],
                               params["v_be2"], params["v_rm2"], params["v_rv2"])
    wl1, bl1 = _fold_linear_bn(params["l_w1"], params["l_b1"], params["l_g1"],
                               params["l_be1"], params["l_rm1"], params["l_rv1"])
    wl2, bl2 = _fold_linear_bn(params["l_w2"], params["l_b2"], params["l_g2"],
                               params["l_be2"], params["l_rm2"], params["l_rv2"])

    # ---- lane-dense zero padding (padded features stay exactly zero end-to-end) ----
    lfeats_p = jnp.pad(lfeats.astype(jnp.float32),
                       ((0, 0), (0, n_pad - n), (0, f_pad - fdim)))
    lang_p = jnp.pad(lang_feats.astype(jnp.float32),
                     ((0, 0), (0, s_pad - num_seq), (0, L_pad - lang_dim)))
    cls_p = jnp.pad(cls.astype(jnp.int32).reshape(bs, 1, n),
                    ((0, 0), (0, 0), (0, n_pad - n)), constant_values=-1)

    wloc_p = _pad2(wloc.astype(jnp.float32), f_pad, J_pad)
    wl1_p = _pad2(wl1, L_pad, J_pad)
    wjj_p = jnp.stack([_pad2(wv1, J_pad, J_pad),                         # (3, J_pad, J_pad)
                       _pad2(wv2, J_pad, J_pad),
                       _pad2(wl2, J_pad, J_pad)])
    bias_p = _pad2(jnp.stack([bloc, bv1, bv2, bl1, bl2]), 8, J_pad)      # (8, J_pad)

    def batch_spec(shape):   # per-batch block, pipelined over the grid
        return pl.BlockSpec((1,) + shape, lambda b: (b, 0, 0))

    def const_spec(shape):   # grid-invariant weight block: DMA'd once, stays in VMEM
        return pl.BlockSpec(shape, lambda b: (0,) * len(shape))

    out_p = pl.pallas_call(
        _attend_location_kernel,
        out_shape=jax.ShapeDtypeStruct((bs, s_pad, n_pad), jnp.float32),
        grid=(bs,),
        in_specs=[
            batch_spec((n_pad, f_pad)),                                  # lfeats
            batch_spec((s_pad, L_pad)),                                  # lang_feats
            batch_spec((1, n_pad)),                                      # cls (as (bs, 1, n_pad))
            const_spec((f_pad, J_pad)),                                  # wloc (scale+fc folded)
            const_spec((L_pad, J_pad)),                                  # wl1
            const_spec((3, J_pad, J_pad)),                               # [wv1, wv2, wl2]
            const_spec((8, J_pad)),                                      # [bloc,bv1,bv2,bl1,bl2]
        ],
        out_specs=batch_spec((s_pad, n_pad)),
        compiler_params=pltpu.CompilerParams(dimension_semantics=("parallel",)),
    )(lfeats_p, lang_p, cls_p, wloc_p, wl1_p, wjj_p, bias_p)

    return out_p[:, :num_seq, :n]


def _reference(lfeats, lang_feats, cls, params):
    """Pure-JAX mirror of the PyTorch eval-mode forward (unfused, unpadded)."""
    bs, n, _ = lfeats.shape
    num_seq = lang_feats.shape[1]

    def l2norm(x):
        return x / jnp.maximum(jnp.sqrt(jnp.sum(x * x, axis=1, keepdims=True)), _EPS)

    def bn(x, g, b, rm, rv):
        return (x - rm) / jnp.sqrt(rv + _BN_EPS) * g + b

    x = lfeats.reshape(bs * n, -1)
    x = l2norm(x) * params["norm_w"]                          # NormalizeScale
    loc = x @ params["fc_w"].T + params["fc_b"]               # fc

    h = bn(loc @ params["v_w1"].T + params["v_b1"], params["v_g1"], params["v_be1"],
           params["v_rm1"], params["v_rv1"])
    h = jnp.maximum(h, 0.0)                                   # Dropout = identity (eval)
    v = bn(h @ params["v_w2"].T + params["v_b2"], params["v_g2"], params["v_be2"],
           params["v_rm2"], params["v_rv2"])
    v = l2norm(v).reshape(bs, n, -1)

    y = lang_feats.reshape(bs * num_seq, -1)
    g = bn(y @ params["l_w1"].T + params["l_b1"], params["l_g1"], params["l_be1"],
           params["l_rm1"], params["l_rv1"])
    g = jnp.maximum(g, 0.0)
    l = bn(g @ params["l_w2"].T + params["l_b2"], params["l_g2"], params["l_be2"],
           params["l_rm2"], params["l_rv2"])
    l = l2norm(l).reshape(bs, num_seq, -1)

    cos = jnp.einsum("bsj,bnj->bsn", l, v)
    mask = (cls != -1).astype(jnp.float32)[:, None, :]
    cos = cos * mask
    cos = jnp.where(mask == 0, _MIN_VALUE, cos)
    return cos


if __name__ == "__main__":
    bs, n, num_seq = 2, 16, 8
    fdim, jemb_dim, dim_lang = 5, 32, 64
    visual_init_norm = 20.0

    key = jax.random.PRNGKey(0)
    kp, kx = jax.random.split(key)
    pkeys = iter(jax.random.split(kp, 32))

    def rnd(shape, scale=0.1):
        return jax.random.normal(next(pkeys), shape, jnp.float32) * scale

    def runi(shape):
        return jax.random.uniform(next(pkeys), shape, jnp.float32, 0.5, 1.5)

    params = {
        "norm_w": jnp.full((1, fdim), visual_init_norm, jnp.float32),   # NormalizeScale weight
        "fc_w": rnd((jemb_dim, fdim)), "fc_b": rnd((jemb_dim,)),
        # matching.vis_emb_fc: Linear -> BN -> ReLU -> Dropout -> Linear -> BN
        "v_w1": rnd((jemb_dim, jemb_dim)), "v_b1": rnd((jemb_dim,)),
        "v_g1": 1.0 + rnd((jemb_dim,)), "v_be1": rnd((jemb_dim,)),
        "v_rm1": rnd((jemb_dim,)), "v_rv1": runi((jemb_dim,)),
        "v_w2": rnd((jemb_dim, jemb_dim)), "v_b2": rnd((jemb_dim,)),
        "v_g2": 1.0 + rnd((jemb_dim,)), "v_be2": rnd((jemb_dim,)),
        "v_rm2": rnd((jemb_dim,)), "v_rv2": runi((jemb_dim,)),
        # matching.lang_emb_fc
        "l_w1": rnd((jemb_dim, dim_lang)), "l_b1": rnd((jemb_dim,)),
        "l_g1": 1.0 + rnd((jemb_dim,)), "l_be1": rnd((jemb_dim,)),
        "l_rm1": rnd((jemb_dim,)), "l_rv1": runi((jemb_dim,)),
        "l_w2": rnd((jemb_dim, jemb_dim)), "l_b2": rnd((jemb_dim,)),
        "l_g2": 1.0 + rnd((jemb_dim,)), "l_be2": rnd((jemb_dim,)),
        "l_rm2": rnd((jemb_dim,)), "l_rv2": runi((jemb_dim,)),
    }

    kin = jax.random.split(kx, 3)
    lfeats = jax.random.uniform(kin[0], (bs, n, fdim), jnp.float32)        # box location feats
    lang_feats = jax.random.normal(kin[1], (bs, num_seq, dim_lang), jnp.float32)
    cls = jax.random.randint(kin[2], (bs, n), -1, 10).astype(jnp.int32)    # -1 marks padded boxes

    attn = attend_location_forward(lfeats, lang_feats, cls, params)
    jax.block_until_ready(attn)

    with jax.default_matmul_precision("highest"):
        attn_ref = _reference(lfeats, lang_feats, cls, params)
    # tolerance covers possible reduced-precision f32 MXU paths in either implementation
    np.testing.assert_allclose(np.asarray(attn), np.asarray(attn_ref), rtol=1e-2, atol=1e-2)

    # TODO(synk): training-mode BatchNorm (batch statistics) and Dropout are not modeled;
    # this kernel implements the eval-mode forward with running stats folded into the linears.
    print("KERNEL_OK")
</pallas_src>

<mosaic_0001>
module attributes {stable_mosaic.version = 11 : i64} {
  func.func @_attend_location_kernel(%arg0: i32, %arg1: memref<1x128x8xf32, #tpu.memory_space<vmem>>, %arg2: memref<1x8x128xf32, #tpu.memory_space<vmem>>, %arg3: memref<1x1x128xi32, #tpu.memory_space<vmem>>, %arg4: memref<8x128xf32, #tpu.memory_space<vmem>>, %arg5: memref<128x128xf32, #tpu.memory_space<vmem>>, %arg6: memref<3x128x128xf32, #tpu.memory_space<vmem>>, %arg7: memref<8x128xf32, #tpu.memory_space<vmem>>, %arg8: memref<1x8x128xf32, #tpu.memory_space<vmem>>) attributes {dimension_semantics = [#tpu.dimension_semantics<parallel>], iteration_bounds = array<i64: 2>, scalar_prefetch = 0 : i64, scratch_operands = 0 : i64, tpu.core_type = #tpu.core_type<tc>, window_params = [{transform_indices = @transform_0, window_bounds = array<i64: 1, 128, 8>}, {transform_indices = @transform_1, window_bounds = array<i64: 1, 8, 128>}, {transform_indices = @transform_2, window_bounds = array<i64: 1, 1, 128>}, {pipeline_mode = #tpu.pipeline_mode<synchronous>, transform_indices = @transform_3, window_bounds = array<i64: 8, 128>}, {pipeline_mode = #tpu.pipeline_mode<synchronous>, transform_indices = @transform_4, window_bounds = array<i64: 128, 128>}, {pipeline_mode = #tpu.pipeline_mode<synchronous>, transform_indices = @transform_5, window_bounds = array<i64: 3, 128, 128>}, {pipeline_mode = #tpu.pipeline_mode<synchronous>, transform_indices = @transform_6, window_bounds = array<i64: 8, 128>}, {transform_indices = @transform_7, window_bounds = array<i64: 1, 8, 128>}]} {
    %c0 = arith.constant 0 : index
    %c0_0 = arith.constant 0 : index
    %0 = vector.load %arg7[%c0, %c0_0] : memref<8x128xf32, #tpu.memory_space<vmem>>, vector<1x128xf32>
    %c1 = arith.constant 1 : index
    %c0_1 = arith.constant 0 : index
    %1 = vector.load %arg7[%c1, %c0_1] : memref<8x128xf32, #tpu.memory_space<vmem>>, vector<1x128xf32>
    %c2 = arith.constant 2 : index
    %c0_2 = arith.constant 0 : index
    %2 = vector.load %arg7[%c2, %c0_2] : memref<8x128xf32, #tpu.memory_space<vmem>>, vector<1x128xf32>
    %c3 = arith.constant 3 : index
    %c0_3 = arith.constant 0 : index
    %3 = vector.load %arg7[%c3, %c0_3] : memref<8x128xf32, #tpu.memory_space<vmem>>, vector<1x128xf32>
    %c4 = arith.constant 4 : index
    %c0_4 = arith.constant 0 : index
    %4 = vector.load %arg7[%c4, %c0_4] : memref<8x128xf32, #tpu.memory_space<vmem>>, vector<1x128xf32>
    %c0_5 = arith.constant 0 : index
    %c0_6 = arith.constant 0 : index
    %c0_7 = arith.constant 0 : index
    %5 = vector.load %arg6[%c0_5, %c0_6, %c0_7] : memref<3x128x128xf32, #tpu.memory_space<vmem>>, vector<1x128x128xf32>
    %6 = vector.shape_cast %5 : vector<1x128x128xf32> to vector<128x128xf32>
    %c1_8 = arith.constant 1 : index
    %c0_9 = arith.constant 0 : index
    %c0_10 = arith.constant 0 : index
    %7 = vector.load %arg6[%c1_8, %c0_9, %c0_10] : memref<3x128x128xf32, #tpu.memory_space<vmem>>, vector<1x128x128xf32>
    %8 = vector.shape_cast %7 : vector<1x128x128xf32> to vector<128x128xf32>
    %c2_11 = arith.constant 2 : index
    %c0_12 = arith.constant 0 : index
    %c0_13 = arith.constant 0 : index
    %9 = vector.load %arg6[%c2_11, %c0_12, %c0_13] : memref<3x128x128xf32, #tpu.memory_space<vmem>>, vector<1x128x128xf32>
    %10 = vector.shape_cast %9 : vector<1x128x128xf32> to vector<128x128xf32>
    %c0_14 = arith.constant 0 : index
    %c0_15 = arith.constant 0 : index
    %c0_16 = arith.constant 0 : index
    %11 = vector.load %arg1[%c0_14, %c0_15, %c0_16] : memref<1x128x8xf32, #tpu.memory_space<vmem>>, vector<1x128x8xf32>
    %12 = vector.shape_cast %11 : vector<1x128x8xf32> to vector<128x8xf32>
    %13 = arith.mulf %12, %12 : vector<128x8xf32>
    %cst = arith.constant dense<0.000000e+00> : vector<128xf32>
    %14 = vector.multi_reduction <add>, %13, %cst [1] : vector<128x8xf32> to vector<128xf32>
    %15 = vector.shape_cast %14 : vector<128xf32> to vector<128x1xf32>
    %cst_17 = arith.constant 1.000000e-24 : f32
    %16 = vector.broadcast %cst_17 : f32 to vector<128x1xf32>
    %17 = arith.maximumf %15, %16 : vector<128x1xf32>
    %18 = math.rsqrt %17 : vector<128x1xf32>
    %19 = vector.broadcast %18 : vector<128x1xf32> to vector<128x8xf32>
    %20 = arith.mulf %12, %19 : vector<128x8xf32>
    %c0_18 = arith.constant 0 : index
    %c0_19 = arith.constant 0 : index
    %21 = vector.load %arg4[%c0_18, %c0_19] : memref<8x128xf32, #tpu.memory_space<vmem>>, vector<8x128xf32>
    %cst_20 = arith.constant dense<0.000000e+00> : vector<128x128xf32>
    %22 = tpu.matmul %20, %21, %cst_20 {dimension_numbers = #tpu.dot_dimension_numbers<[1], [0], [0], [1], [0, 0, 1, 1], [], []>} : vector<128x8xf32>, vector<8x128xf32>, vector<128x128xf32> -> vector<128x128xf32>
    %23 = vector.broadcast %0 : vector<1x128xf32> to vector<128x128xf32>
    %24 = arith.addf %22, %23 : vector<128x128xf32>
    %cst_21 = arith.constant dense<0.000000e+00> : vector<128x128xf32>
    %25 = tpu.matmul %24, %6, %cst_21 {dimension_numbers = #tpu.dot_dimension_numbers<[1], [0], [0], [1], [0, 0, 1, 1], [], []>} : vector<128x128xf32>, vector<128x128xf32>, vector<128x128xf32> -> vector<128x128xf32>
    %26 = vector.broadcast %1 : vector<1x128xf32> to vector<128x128xf32>
    %27 = arith.addf %25, %26 : vector<128x128xf32>
    %cst_22 = arith.constant 0.000000e+00 : f32
    %28 = vector.broadcast %cst_22 : f32 to vector<128x128xf32>
    %29 = arith.maximumf %27, %28 : vector<128x128xf32>
    %cst_23 = arith.constant dense<0.000000e+00> : vector<128x128xf32>
    %30 = tpu.matmul %29, %8, %cst_23 {dimension_numbers = #tpu.dot_dimension_numbers<[1], [0], [0], [1], [0, 0, 1, 1], [], []>} : vector<128x128xf32>, vector<128x128xf32>, vector<128x128xf32> -> vector<128x128xf32>
    %31 = vector.broadcast %2 : vector<1x128xf32> to vector<128x128xf32>
    %32 = arith.addf %30, %31 : vector<128x128xf32>
    %33 = arith.mulf %32, %32 : vector<128x128xf32>
    %cst_24 = arith.constant dense<0.000000e+00> : vector<128xf32>
    %34 = vector.multi_reduction <add>, %33, %cst_24 [1] : vector<128x128xf32> to vector<128xf32>
    %35 = vector.shape_cast %34 : vector<128xf32> to vector<128x1xf32>
    %cst_25 = arith.constant 1.000000e-24 : f32
    %36 = vector.broadcast %cst_25 : f32 to vector<128x1xf32>
    %37 = arith.maximumf %35, %36 : vector<128x1xf32>
    %38 = math.rsqrt %37 : vector<128x1xf32>
    %39 = vector.broadcast %38 : vector<128x1xf32> to vector<128x128xf32>
    %40 = arith.mulf %32, %39 : vector<128x128xf32>
    %c0_26 = arith.constant 0 : index
    %c0_27 = arith.constant 0 : index
    %c0_28 = arith.constant 0 : index
    %41 = vector.load %arg2[%c0_26, %c0_27, %c0_28] : memref<1x8x128xf32, #tpu.memory_space<vmem>>, vector<1x8x128xf32>
    %42 = vector.shape_cast %41 : vector<1x8x128xf32> to vector<8x128xf32>
    %c0_29 = arith.constant 0 : index
    %c0_30 = arith.constant 0 : index
    %43 = vector.load %arg5[%c0_29, %c0_30] : memref<128x128xf32, #tpu.memory_space<vmem>>, vector<128x128xf32>
    %cst_31 = arith.constant dense<0.000000e+00> : vector<8x128xf32>
    %44 = tpu.matmul %42, %43, %cst_31 {dimension_numbers = #tpu.dot_dimension_numbers<[1], [0], [0], [1], [0, 0, 1, 1], [], []>} : vector<8x128xf32>, vector<128x128xf32>, vector<8x128xf32> -> vector<8x128xf32>
    %45 = vector.broadcast %3 : vector<1x128xf32> to vector<8x128xf32>
    %46 = arith.addf %44, %45 : vector<8x128xf32>
    %cst_32 = arith.constant 0.000000e+00 : f32
    %47 = vector.broadcast %cst_32 : f32 to vector<8x128xf32>
    %48 = arith.maximumf %46, %47 : vector<8x128xf32>
    %cst_33 = arith.constant dense<0.000000e+00> : vector<8x128xf32>
    %49 = tpu.matmul %48, %10, %cst_33 {dimension_numbers = #tpu.dot_dimension_numbers<[1], [0], [0], [1], [0, 0, 1, 1], [], []>} : vector<8x128xf32>, vector<128x128xf32>, vector<8x128xf32> -> vector<8x128xf32>
    %50 = vector.broadcast %4 : vector<1x128xf32> to vector<8x128xf32>
    %51 = arith.addf %49, %50 : vector<8x128xf32>
    %52 = arith.mulf %51, %51 : vector<8x128xf32>
    %cst_34 = arith.constant dense<0.000000e+00> : vector<8xf32>
    %53 = vector.multi_reduction <add>, %52, %cst_34 [1] : vector<8x128xf32> to vector<8xf32>
    %54 = vector.shape_cast %53 : vector<8xf32> to vector<8x1xf32>
    %cst_35 = arith.constant 1.000000e-24 : f32
    %55 = vector.broadcast %cst_35 : f32 to vector<8x1xf32>
    %56 = arith.maximumf %54, %55 : vector<8x1xf32>
    %57 = math.rsqrt %56 : vector<8x1xf32>
    %58 = vector.broadcast %57 : vector<8x1xf32> to vector<8x128xf32>
    %59 = arith.mulf %51, %58 : vector<8x128xf32>
    %60 = tpu.transpose %40, [1, 0] : vector<128x128xf32> -> vector<128x128xf32>
    %cst_36 = arith.constant dense<0.000000e+00> : vector<8x128xf32>
    %61 = tpu.matmul %59, %60, %cst_36 {dimension_numbers = #tpu.dot_dimension_numbers<[1], [0], [0], [1], [0, 0, 1, 1], [], []>} : vector<8x128xf32>, vector<128x128xf32>, vector<8x128xf32> -> vector<8x128xf32>
    %c0_37 = arith.constant 0 : index
    %c0_38 = arith.constant 0 : index
    %c0_39 = arith.constant 0 : index
    %62 = vector.load %arg3[%c0_37, %c0_38, %c0_39] : memref<1x1x128xi32, #tpu.memory_space<vmem>>, vector<1x1x128xi32>
    %63 = vector.shape_cast %62 : vector<1x1x128xi32> to vector<1x128xi32>
    %c-1_i32 = arith.constant -1 : i32
    %64 = vector.broadcast %c-1_i32 : i32 to vector<1x128xi32>
    %65 = arith.cmpi ne, %63, %64 : vector<1x128xi32>
    %cst_40 = arith.constant -1.000000e+00 : f32
    %66 = vector.shape_cast %65 : vector<1x128xi1> to vector<1x128xi1>
    %67 = vector.broadcast %66 : vector<1x128xi1> to vector<8x128xi1>
    %68 = vector.broadcast %cst_40 : f32 to vector<8x128xf32>
    %69 = arith.select %67, %61, %68 : vector<8x128xi1>, vector<8x128xf32>
    %c0_41 = arith.constant 0 : index
    %c0_42 = arith.constant 0 : index
    %c0_43 = arith.constant 0 : index
    %70 = vector.load %arg8[%c0_41, %c0_42, %c0_43] : memref<1x8x128xf32, #tpu.memory_space<vmem>>, vector<1x8x128xf32>
    %71 = vector.shape_cast %70 : vector<1x8x128xf32> to vector<8x128xf32>
    %72 = vector.shape_cast %69 : vector<8x128xf32> to vector<1x8x128xf32>
    tpu.vector_store %arg8[%c0_41, %c0_42, %c0_43], %72 {strides = array<i32>} : memref<1x8x128xf32, #tpu.memory_space<vmem>>, vector<1x8x128xf32>,
    return
  }
  func.func @transform_0(%arg0: i32) -> (i32, i32, i32) {
    %c0_i32 = arith.constant 0 : i32
    %c0_i32_0 = arith.constant 0 : i32
    %c0_i32_1 = arith.constant 0 : i32
    return %arg0, %c0_i32, %c0_i32_0 : i32, i32, i32
  }
  func.func @transform_1(%arg0: i32) -> (i32, i32, i32) {
    %c0_i32 = arith.constant 0 : i32
    %c0_i32_0 = arith.constant 0 : i32
    %c0_i32_1 = arith.constant 0 : i32
    return %arg0, %c0_i32, %c0_i32_0 : i32, i32, i32
  }
  func.func @transform_2(%arg0: i32) -> (i32, i32, i32) {
    %c0_i32 = arith.constant 0 : i32
    %c0_i32_0 = arith.constant 0 : i32
    %c0_i32_1 = arith.constant 0 : i32
    return %arg0, %c0_i32, %c0_i32_0 : i32, i32, i32
  }
  func.func @transform_3(%arg0: i32) -> (i32, i32) {
    %c0_i32 = arith.constant 0 : i32
    %c0_i32_0 = arith.constant 0 : i32
    %c0_i32_1 = arith.constant 0 : i32
    return %c0_i32, %c0_i32_0 : i32, i32
  }
  func.func @transform_4(%arg0: i32) -> (i32, i32) {
    %c0_i32 = arith.constant 0 : i32
    %c0_i32_0 = arith.constant 0 : i32
    %c0_i32_1 = arith.constant 0 : i32
    return %c0_i32, %c0_i32_0 : i32, i32
  }
  func.func @transform_5(%arg0: i32) -> (i32, i32, i32) {
    %c0_i32 = arith.constant 0 : i32
    %c0_i32_0 = arith.constant 0 : i32
    %c0_i32_1 = arith.constant 0 : i32
    %c0_i32_2 = arith.constant 0 : i32
    return %c0_i32, %c0_i32_0, %c0_i32_1 : i32, i32, i32
  }
  func.func @transform_6(%arg0: i32) -> (i32, i32) {
    %c0_i32 = arith.constant 0 : i32
    %c0_i32_0 = arith.constant 0 : i32
    %c0_i32_1 = arith.constant 0 : i32
    return %c0_i32, %c0_i32_0 : i32, i32
  }
  func.func @transform_7(%arg0: i32) -> (i32, i32, i32) {
    %c0_i32 = arith.constant 0 : i32
    %c0_i32_0 = arith.constant 0 : i32
    %c0_i32_1 = arith.constant 0 : i32
    return %arg0, %c0_i32, %c0_i32_0 : i32, i32, i32
  }
}

</mosaic_0001>

<llo_original>
// kernel: tpu_custom_call.1
$region0: #{tpu_custom_call.1}
  #allocation0 [shape = 'u32[]', space=smem, size = 0x4, offset = 0x4, fixed_abs, tag = 'smem constant byte address 0x4 - core index']
  #allocation1 [shape = 'u32[144,128]{1,0:T(1,128)}', space=vmem, size = 0x12000, scoped, tag = 'internal scratch']
  %s0 = inlined_call_operand.vmem [shape: f32[2,128,8], index: 0, kind: input, shape index: {}]
  %s1 = inlined_call_operand.vmem [shape: f32[2,8,128], index: 1, kind: input, shape index: {}]
  %s2 = inlined_call_operand.vmem [shape: s32[2,1,128], index: 2, kind: input, shape index: {}]
  %s3 = inlined_call_operand.vmem [shape: f32[8,128], index: 3, kind: input, shape index: {}]
  %s4 = inlined_call_operand.vmem [shape: f32[128,128], index: 4, kind: input, shape index: {}]
  %s5 = inlined_call_operand.hbm [shape: f32[3,128,128], index: 5, kind: input, shape index: {}]
  %s6 = inlined_call_operand.vmem [shape: f32[8,128], index: 6, kind: input, shape index: {}]
  %s7 = inlined_call_operand.hbm [shape: f32[2,8,128], index: 7, kind: output, shape index: {}]
  %s8 = sld [smem:[#allocation0]]
  $region65: #{tpu_custom_call.1} parent=0
    _
  %s10 = ssub.s32 1, %s8
  %s11 = scalar_select 0, %s10, %s8
  $region1: #{tpu_custom_call.1} parent=0
    #allocation2 [shape = 'u8[196608]{0}', space=vmem, size = 0x30000, scoped, tag = 'input window, operand 5, single buffered']
    #allocation3 [shape = 's32[2]{0}', space=sflag, size = 0x8, scoped, tag = 'scoped memory for tpu_custom_call.1']
    #allocation4 [shape = 's32[2]{0}', space=sflag, size = 0x8, scoped, tag = 'scoped memory for tpu_custom_call.1']
    #allocation5 [shape = 'u8[8192]{0}', space=vmem, size = 0x2000, scoped, tag = 'output window, operand 0']
    %12 = vsyncpa [#allocation3], 0
    %13 = vsyncpa [#allocation4], 0
    %s14 = scalar_lea.sflag [#allocation4], 1
    %15 = vsyncpa %s14, 0
    loop: start=0, step=1, limit=4
    $region2: #{tpu_custom_call.1} parent=1 // loop_pre_header
      _
    $region3: #{tpu_custom_call.1} parent=1 // loop_header
      %s17 = sphi 0, %s21
      %p18 = scmp.ge.s32.totalorder %s17, 4
      %s27 = sphi 0, %s29
      %s30 = sphi 0, %s27
      %s31 = sphi 0, %s30
      %s47 = sphi 0, %s31
      %s53 = sphi 0, %s55
      %s56 = sphi 0, %s53
      %s57 = sphi 0, %s56
      %s73 = sphi 0, %s57
      %s79 = sphi 0, %s81
      %s82 = sphi 0, %s79
      %s83 = sphi 0, %s82
      %s99 = sphi 0, %s83
      %s103 = sphi 0, %s103
      %s105 = sphi 0, %s103
      %s106 = sphi 0, %s105
      %s120 = sphi 0, %s106
      %s124 = sphi 0, %s124
      %s126 = sphi 0, %s124
      %s127 = sphi 0, %s126
      %s141 = sphi 0, %s127
      %s145 = sphi 0, %s145
      %s147 = sphi 0, %s145
      %s148 = sphi 0, %s147
      %s162 = sphi 0, %s148
      %s166 = sphi 0, %s166
      %s168 = sphi 0, %s166
      %s169 = sphi 0, %s168
      %s183 = sphi 0, %s169
      %s189 = sphi 0, %s191
      %s192 = sphi 0, %s189
      %s193 = sphi 0, %s192
      %s209 = sphi 0, %s193
    $region4: #{tpu_custom_call.1} parent=1 // loop_header_branch
      %20 = sbr.rel (%p18) target = $region8
    $region5: #{tpu_custom_call.1} parent=1 // loop_body
      %s22 = ssub.s32 %s17, 1
      %s23 = ssub.s32 %s17, 2
      %s24 = sadd.s32 %s17, 1
      %s25 = ssub.s32 %s17, %s24
      %p26 = scmp.eq.s32.totalorder %s25, 0
      %s28 = sadd.s32 %s27, 1
      %s29 = scalar_select %p26, %s27, %s28
      %p32 = pneg %p26
      %p33 = scmp.eq.s32.totalorder %s17, 1
      %p34 = por %p32, %p33
      %p35 = scmp.ne.s32.totalorder %s27, %s30
      %p36 = scmp.eq.s32.totalorder %s17, 0
      %p37 = por %p35, %p36
      %p38 = scmp.ne.s32.totalorder %s27, %s30
      %p39 = scmp.eq.s32.totalorder %s22, 1
      %p40 = por %p38, %p39
      %p41 = scmp.ne.s32.totalorder %s30, %s31
      %p42 = scmp.eq.s32.totalorder %s22, 0
      %p43 = por %p41, %p42
      %p44 = scmp.ne.s32.totalorder %s30, %s31
      %p45 = scmp.eq.s32.totalorder %s23, 1
      %p46 = por %p44, %p45
      %p48 = scmp.ne.s32.totalorder %s31, %s47
      %p49 = scmp.eq.s32.totalorder %s23, 0
      %p50 = por %p48, %p49
      %s51 = ssub.s32 %s17, %s24
      %p52 = scmp.eq.s32.totalorder %s51, 0
      %s54 = sadd.s32 %s53, 1
      %s55 = scalar_select %p52, %s53, %s54
      %p58 = pneg %p52
      %p59 = scmp.eq.s32.totalorder %s17, 1
      %p60 = por %p58, %p59
      %p61 = scmp.ne.s32.totalorder %s53, %s56
      %p62 = scmp.eq.s32.totalorder %s17, 0
      %p63 = por %p61, %p62
      %p64 = scmp.ne.s32.totalorder %s53, %s56
      %p65 = scmp.eq.s32.totalorder %s22, 1
      %p66 = por %p64, %p65
      %p67 = scmp.ne.s32.totalorder %s56, %s57
      %p68 = scmp.eq.s32.totalorder %s22, 0
      %p69 = por %p67, %p68
      %p70 = scmp.ne.s32.totalorder %s56, %s57
      %p71 = scmp.eq.s32.totalorder %s23, 1
      %p72 = por %p70, %p71
      %p74 = scmp.ne.s32.totalorder %s57, %s73
      %p75 = scmp.eq.s32.totalorder %s23, 0
      %p76 = por %p74, %p75
      %s77 = ssub.s32 %s17, %s24
      %p78 = scmp.eq.s32.totalorder %s77, 0
      %s80 = sadd.s32 %s79, 1
      %s81 = scalar_select %p78, %s79, %s80
      %p84 = pneg %p78
      %p85 = scmp.eq.s32.totalorder %s17, 1
      %p86 = por %p84, %p85
      %p87 = scmp.ne.s32.totalorder %s79, %s82
      %p88 = scmp.eq.s32.totalorder %s17, 0
      %p89 = por %p87, %p88
      %p90 = scmp.ne.s32.totalorder %s79, %s82
      %p91 = scmp.eq.s32.totalorder %s22, 1
      %p92 = por %p90, %p91
      %p93 = scmp.ne.s32.totalorder %s82, %s83
      %p94 = scmp.eq.s32.totalorder %s22, 0
      %p95 = por %p93, %p94
      %p96 = scmp.ne.s32.totalorder %s82, %s83
      %p97 = scmp.eq.s32.totalorder %s23, 1
      %p98 = por %p96, %p97
      %p100 = scmp.ne.s32.totalorder %s83, %s99
      %p101 = scmp.eq.s32.totalorder %s23, 0
      %p102 = por %p100, %p101
      %s104 = sadd.s32 %s103, 1
      %p107 = scmp.eq.s32.totalorder %s17, 1
      %p108 = scmp.ne.s32.totalorder %s103, %s105
      %p109 = scmp.eq.s32.totalorder %s17, 0
      %p110 = por %p108, %p109
      %p111 = scmp.ne.s32.totalorder %s103, %s105
      %p112 = scmp.eq.s32.totalorder %s22, 1
      %p113 = por %p111, %p112
      %p114 = scmp.ne.s32.totalorder %s105, %s106
      %p115 = scmp.eq.s32.totalorder %s22, 0
      %p116 = por %p114, %p115
      %p117 = scmp.ne.s32.totalorder %s105, %s106
      %p118 = scmp.eq.s32.totalorder %s23, 1
      %p119 = por %p117, %p118
      %p121 = scmp.ne.s32.totalorder %s106, %s120
      %p122 = scmp.eq.s32.totalorder %s23, 0
      %p123 = por %p121, %p122
      %s125 = sadd.s32 %s124, 1
      %p128 = scmp.eq.s32.totalorder %s17, 1
      %p129 = scmp.ne.s32.totalorder %s124, %s126
      %p130 = scmp.eq.s32.totalorder %s17, 0
      %p131 = por %p129, %p130
      %p132 = scmp.ne.s32.totalorder %s124, %s126
      %p133 = scmp.eq.s32.totalorder %s22, 1
      %p134 = por %p132, %p133
      %p135 = scmp.ne.s32.totalorder %s126, %s127
      %p136 = scmp.eq.s32.totalorder %s22, 0
      %p137 = por %p135, %p136
      %p138 = scmp.ne.s32.totalorder %s126, %s127
      %p139 = scmp.eq.s32.totalorder %s23, 1
      %p140 = por %p138, %p139
      %p142 = scmp.ne.s32.totalorder %s127, %s141
      %p143 = scmp.eq.s32.totalorder %s23, 0
      %p144 = por %p142, %p143
      %s146 = sadd.s32 %s145, 1
      %p149 = scmp.eq.s32.totalorder %s17, 1
      %p150 = scmp.ne.s32.totalorder %s145, %s147
      %p151 = scmp.eq.s32.totalorder %s17, 0
      %p152 = por %p150, %p151
      %p153 = scmp.ne.s32.totalorder %s145, %s147
      %p154 = scmp.eq.s32.totalorder %s22, 1
      %p155 = por %p153, %p154
      %p156 = scmp.ne.s32.totalorder %s147, %s148
      %p157 = scmp.eq.s32.totalorder %s22, 0
      %p158 = por %p156, %p157
      %p159 = scmp.ne.s32.totalorder %s147, %s148
      %p160 = scmp.eq.s32.totalorder %s23, 1
      %p161 = por %p159, %p160
      %p163 = scmp.ne.s32.totalorder %s148, %s162
      %p164 = scmp.eq.s32.totalorder %s23, 0
      %p165 = por %p163, %p164
      %s167 = sadd.s32 %s166, 1
      %p170 = scmp.eq.s32.totalorder %s17, 1
      %p171 = scmp.ne.s32.totalorder %s166, %s168
      %p172 = scmp.eq.s32.totalorder %s17, 0
      %p173 = por %p171, %p172
      %p174 = scmp.ne.s32.totalorder %s166, %s168
      %p175 = scmp.eq.s32.totalorder %s22, 1
      %p176 = por %p174, %p175
      %p177 = scmp.ne.s32.totalorder %s168, %s169
      %p178 = scmp.eq.s32.totalorder %s22, 0
      %p179 = por %p177, %p178
      %p180 = scmp.ne.s32.totalorder %s168, %s169
      %p181 = scmp.eq.s32.totalorder %s23, 1
      %p182 = por %p180, %p181
      %p184 = scmp.ne.s32.totalorder %s169, %s183
      %p185 = scmp.eq.s32.totalorder %s23, 0
      %p186 = por %p184, %p185
      %s187 = ssub.s32 %s17, %s24
      %p188 = scmp.eq.s32.totalorder %s187, 0
      %s190 = sadd.s32 %s189, 1
      %s191 = scalar_select %p188, %s189, %s190
      %p194 = pneg %p188
      %p195 = scmp.eq.s32.totalorder %s17, 1
      %p196 = por %p194, %p195
      %p197 = scmp.ne.s32.totalorder %s189, %s192
      %p198 = scmp.eq.s32.totalorder %s17, 0
      %p199 = por %p197, %p198
      %p200 = scmp.ne.s32.totalorder %s189, %s192
      %p201 = scmp.eq.s32.totalorder %s22, 1
      %p202 = por %p200, %p201
      %p203 = scmp.ne.s32.totalorder %s192, %s193
      %p204 = scmp.eq.s32.totalorder %s22, 0
      %p205 = por %p203, %p204
      %p206 = scmp.ne.s32.totalorder %s192, %s193
      %p207 = scmp.eq.s32.totalorder %s23, 1
      %p208 = por %p206, %p207
      %p210 = scmp.ne.s32.totalorder %s193, %s209
      %p211 = scmp.eq.s32.totalorder %s23, 0
      %p212 = por %p210, %p211
      %p213 = scmp.le.s32.totalorder 1, %s17
      %p214 = scmp.lt.s32.totalorder %s17, 3
      %p215 = pnand %p213, %p214
      %p216 = pneg %p215
      // Predicated region
      $region9: #{tpu_custom_call.1} parent=5 // pred_check
        _
      $region10: #{tpu_custom_call.1} parent=5 // pred_check_branch
        %218 = sbr.rel (%p215) target = $region12
      $region11: #{tpu_custom_call.1} parent=5 // pred_region
        %s219 = ssub.s32 %s17, 1
        // Predicated region
        $region13: #{tpu_custom_call.1} parent=11 // pred_check
          %p220 = pneg %p116
        $region14: #{tpu_custom_call.1} parent=11 // pred_check_branch
          %222 = sbr.rel (%p220) target = $region16
        $region15: #{tpu_custom_call.1} parent=11 // pred_region
          _
        $region16: #{tpu_custom_call.1} parent=11 // pred_fallthru
          _
        // Predicated region
        $region17: #{tpu_custom_call.1} parent=11 // pred_check
          %p223 = pneg %p137
        $region18: #{tpu_custom_call.1} parent=11 // pred_check_branch
          %225 = sbr.rel (%p223) target = $region20
        $region19: #{tpu_custom_call.1} parent=11 // pred_region
          _
        $region20: #{tpu_custom_call.1} parent=11 // pred_fallthru
          _
        // Predicated region
        $region21: #{tpu_custom_call.1} parent=11 // pred_check
          %p226 = pneg %p158
        $region22: #{tpu_custom_call.1} parent=11 // pred_check_branch
          %228 = sbr.rel (%p226) target = $region24
        $region23: #{tpu_custom_call.1} parent=11 // pred_region
          %s230 = ssub.s32 6144, 6144
          %231 = vsyncadd [#allocation3], %s230
          %s232 = sshll.u32 [#allocation2], 4
          %s233 = int_to_ptr.vmem [resolvable:$true] %s232
          %238 = dma.hbm_to_vmem [thread:$0]  %s5, 6144, %s233, [#allocation3], 128, 128, 8
        $region24: #{tpu_custom_call.1} parent=11 // pred_fallthru
          _
        // Predicated region
        $region25: #{tpu_custom_call.1} parent=11 // pred_check
          %p239 = pneg %p179
        $region26: #{tpu_custom_call.1} parent=11 // pred_check_branch
          %241 = sbr.rel (%p239) target = $region28
        $region27: #{tpu_custom_call.1} parent=11 // pred_region
          _
        $region28: #{tpu_custom_call.1} parent=11 // pred_fallthru
          _
      $region12: #{tpu_custom_call.1} parent=5 // pred_fallthru
        _
      %p242 = scmp.lt.s32.totalorder %s17, 2
      // Predicated region
      $region29: #{tpu_custom_call.1} parent=5 // pred_check
        %p243 = pneg %p242
      $region30: #{tpu_custom_call.1} parent=5 // pred_check_branch
        %245 = sbr.rel (%p243) target = $region32
      $region31: #{tpu_custom_call.1} parent=5 // pred_region
        // Predicated region
        $region33: #{tpu_custom_call.1} parent=31 // pred_check
          %p246 = pneg %p37
        $region34: #{tpu_custom_call.1} parent=31 // pred_check_branch
          %248 = sbr.rel (%p246) target = $region36
        $region35: #{tpu_custom_call.1} parent=31 // pred_region
          %p249 = scmp.lt.s32.totalorder %s17, 1
          %s250 = scalar_select %p249, %s17, 1
          %s251 = smul.addr %s250, 16
          %s252 = smul.addr %s251, 8
          %s253 = scalar_lea.vmem %s0, %s252
        $region36: #{tpu_custom_call.1} parent=31 // pred_fallthru
          _
        // Predicated region
        $region37: #{tpu_custom_call.1} parent=31 // pred_check
          %p254 = pneg %p63
        $region38: #{tpu_custom_call.1} parent=31 // pred_check_branch
          %256 = sbr.rel (%p254) target = $region40
        $region39: #{tpu_custom_call.1} parent=31 // pred_region
          %p257 = scmp.lt.s32.totalorder %s17, 1
          %s258 = scalar_select %p257, %s17, 1
          %s259 = smul.addr %s258, 8
          %s260 = scalar_lea.vmem %s1, %s259
        $region40: #{tpu_custom_call.1} parent=31 // pred_fallthru
          _
        // Predicated region
        $region41: #{tpu_custom_call.1} parent=31 // pred_check
          %p261 = pneg %p89
        $region42: #{tpu_custom_call.1} parent=31 // pred_check_branch
          %263 = sbr.rel (%p261) target = $region44
        $region43: #{tpu_custom_call.1} parent=31 // pred_region
          %p264 = scmp.lt.s32.totalorder %s17, 1
          %s265 = scalar_select %p264, %s17, 1
          %s266 = scalar_lea.vmem %s2, %s265
        $region44: #{tpu_custom_call.1} parent=31 // pred_fallthru
          _
      $region32: #{tpu_custom_call.1} parent=5 // pred_fallthru
        _
      %p267 = scmp.le.s32.totalorder 1, %s17
      %p268 = scmp.lt.s32.totalorder %s17, 3
      %p269 = pnand %p267, %p268
      %p270 = pneg %p269
      // Predicated region
      $region45: #{tpu_custom_call.1} parent=5 // pred_check
        _
      $region46: #{tpu_custom_call.1} parent=5 // pred_check_branch
        %272 = sbr.rel (%p269) target = $region48
      $region47: #{tpu_custom_call.1} parent=5 // pred_region
        %s273 = ssub.s32 %s17, 1
        // Predicated region
        $region49: #{tpu_custom_call.1} parent=47 // pred_check
          %p274 = pneg %p158
        $region50: #{tpu_custom_call.1} parent=47 // pred_check_branch
          %276 = sbr.rel (%p274) target = $region52
        $region51: #{tpu_custom_call.1} parent=47 // pred_region
          %277 = dma.done [#allocation3], 6144
        $region52: #{tpu_custom_call.1} parent=47 // pred_fallthru
          _
        %p278 = scmp.lt.s32.totalorder %s22, 1
        %s279 = scalar_select %p278, %s22, 1
        %s280 = smul.addr %s279, 16
        %s281 = smul.addr %s280, 8
        %s282 = scalar_lea.vmem %s0, %s281
        %p283 = pneg %p43
        %p284 = pneg %p40
        %p285 = scmp.lt.s32.totalorder %s22, 1
        %s286 = scalar_select %p285, %s22, 1
        %s287 = smul.addr %s286, 8
        %s288 = scalar_lea.vmem %s1, %s287
        %p289 = pneg %p69
        %p290 = pneg %p66
        %p291 = scmp.lt.s32.totalorder %s22, 1
        %s292 = scalar_select %p291, %s22, 1
        %s293 = scalar_lea.vmem %s2, %s292
        %p294 = pneg %p95
        %p295 = pneg %p92
        %p296 = pneg %p116
        %p297 = pneg %p113
        %p298 = pneg %p137
        %p299 = pneg %p134
        %p300 = pneg %p158
        %p301 = pneg %p155
        %p302 = pneg %p179
        %p303 = pneg %p176
        %p304 = pneg %p205
        %p305 = pneg %p202
        %s306 = sand.u32 %s192, 1
        %s307 = scalar_lea.sflag [#allocation4], %s306
        %s308 = sand.u32 %s192, 1
        %s309 = smul.addr %s308, 8
        %s310 = scalar_lea.vmem [#allocation5], %s309
        %p311 = scmp.lt.s32.totalorder %s22, 1
        %s312 = scalar_select %p311, %s22, 1
        %s313 = smul.addr %s312, 16
        %s314 = smul.addr %s313, 8
        %s315 = scalar_lea.vmem %s0, %s314
        %p316 = scmp.lt.s32.totalorder %s22, 1
        %s317 = scalar_select %p316, %s22, 1
        %s318 = smul.addr %s317, 8
        %s319 = scalar_lea.vmem %s1, %s318
        %p320 = scmp.lt.s32.totalorder %s22, 1
        %s321 = scalar_select %p320, %s22, 1
        %s322 = scalar_lea.vmem %s2, %s321
        %v323 = vld [vmem:[%s6] sm:$0x1]
        %v324 = vld [vmem:[%s6 + $0x1] sm:$0x1]
        %v325 = vld [vmem:[%s6 + $0x2] sm:$0x1]
        %v326 = vld [vmem:[%s6 + $0x3] sm:$0x1]
        %v327 = vld [vmem:[%s6 + $0x4] sm:$0x1]
        %v328 = vld [vmem:[#allocation2] sm:$0xff]
        %v329 = vld [vmem:[#allocation2 + $0x8] sm:$0xff]
        %v330 = vld [vmem:[#allocation2 + $0x10] sm:$0xff]
        %v331 = vld [vmem:[#allocation2 + $0x18] sm:$0xff]
        %v332 = vld [vmem:[#allocation2 + $0x20] sm:$0xff]
        %v333 = vld [vmem:[#allocation2 + $0x28] sm:$0xff]
        %v334 = vld [vmem:[#allocation2 + $0x30] sm:$0xff]
        %v335 = vld [vmem:[#allocation2 + $0x38] sm:$0xff]
        %v336 = vld [vmem:[#allocation2 + $0x40] sm:$0xff]
        %v337 = vld [vmem:[#allocation2 + $0x48] sm:$0xff]
        %v338 = vld [vmem:[#allocation2 + $0x50] sm:$0xff]
        %v339 = vld [vmem:[#allocation2 + $0x58] sm:$0xff]
        %v340 = vld [vmem:[#allocation2 + $0x60] sm:$0xff]
        %v341 = vld [vmem:[#allocation2 + $0x68] sm:$0xff]
        %v342 = vld [vmem:[#allocation2 + $0x70] sm:$0xff]
        %v343 = vld [vmem:[#allocation2 + $0x78] sm:$0xff]
        %s344 = scalar_lea.vmem [#allocation2], 128
        %v345 = vld [vmem:[%s344] sm:$0xff]
        %v346 = vld [vmem:[%s344 + $0x8] sm:$0xff]
        %v347 = vld [vmem:[%s344 + $0x10] sm:$0xff]
        %v348 = vld [vmem:[%s344 + $0x18] sm:$0xff]
        %v349 = vld [vmem:[%s344 + $0x20] sm:$0xff]
        %v350 = vld [vmem:[%s344 + $0x28] sm:$0xff]
        %v351 = vld [vmem:[%s344 + $0x30] sm:$0xff]
        %v352 = vld [vmem:[%s344 + $0x38] sm:$0xff]
        %v353 = vld [vmem:[%s344 + $0x40] sm:$0xff]
        %v354 = vld [vmem:[%s344 + $0x48] sm:$0xff]
        %v355 = vld [vmem:[%s344 + $0x50] sm:$0xff]
        %v356 = vld [vmem:[%s344 + $0x58] sm:$0xff]
        %v357 = vld [vmem:[%s344 + $0x60] sm:$0xff]
        %v358 = vld [vmem:[%s344 + $0x68] sm:$0xff]
        %v359 = vld [vmem:[%s344 + $0x70] sm:$0xff]
        %v360 = vld [vmem:[%s344 + $0x78] sm:$0xff]
        %s361 = scalar_lea.vmem [#allocation2], 256
        %v362 = vld [vmem:[%s361] sm:$0xff]
        %v363 = vld [vmem:[%s361 + $0x8] sm:$0xff]
        %v364 = vld [vmem:[%s361 + $0x10] sm:$0xff]
        %v365 = vld [vmem:[%s361 + $0x18] sm:$0xff]
        %v366 = vld [vmem:[%s361 + $0x20] sm:$0xff]
        %v367 = vld [vmem:[%s361 + $0x28] sm:$0xff]
        %v368 = vld [vmem:[%s361 + $0x30] sm:$0xff]
        %v369 = vld [vmem:[%s361 + $0x38] sm:$0xff]
        %v370 = vld [vmem:[%s361 + $0x40] sm:$0xff]
        %v371 = vld [vmem:[%s361 + $0x48] sm:$0xff]
        %v372 = vld [vmem:[%s361 + $0x50] sm:$0xff]
        %v373 = vld [vmem:[%s361 + $0x58] sm:$0xff]
        %v374 = vld [vmem:[%s361 + $0x60] sm:$0xff]
        %v375 = vld [vmem:[%s361 + $0x68] sm:$0xff]
        %v376 = vld [vmem:[%s361 + $0x70] sm:$0xff]
        %v377 = vld [vmem:[%s361 + $0x78] sm:$0xff]
        %v378 = vld [vmem:[%s315] sm:$0xff]
        %v379 = vld [vmem:[%s315 + $0x8] sm:$0xff]
        %v380 = vld [vmem:[%s315 + $0x10] sm:$0xff]
        %v381 = vld [vmem:[%s315 + $0x18] sm:$0xff]
        %v382 = vld [vmem:[%s315 + $0x20] sm:$0xff]
        %v383 = vld [vmem:[%s315 + $0x28] sm:$0xff]
        %v384 = vld [vmem:[%s315 + $0x30] sm:$0xff]
        %v385 = vld [vmem:[%s315 + $0x38] sm:$0xff]
        %v386 = vld [vmem:[%s315 + $0x40] sm:$0xff]
        %v387 = vld [vmem:[%s315 + $0x48] sm:$0xff]
        %v388 = vld [vmem:[%s315 + $0x50] sm:$0xff]
        %v389 = vld [vmem:[%s315 + $0x58] sm:$0xff]
        %v390 = vld [vmem:[%s315 + $0x60] sm:$0xff]
        %v391 = vld [vmem:[%s315 + $0x68] sm:$0xff]
        %v392 = vld [vmem:[%s315 + $0x70] sm:$0xff]
        %v393 = vld [vmem:[%s315 + $0x78] sm:$0xff]
        %v394 = vmul.f32 %v378, %v378
        %v395 = vmul.f32 %v379, %v379
        %v396 = vmul.f32 %v380, %v380
        %v397 = vmul.f32 %v381, %v381
        %v398 = vmul.f32 %v382, %v382
        %v399 = vmul.f32 %v383, %v383
        %v400 = vmul.f32 %v384, %v384
        %v401 = vmul.f32 %v385, %v385
        %v402 = vmul.f32 %v386, %v386
        %v403 = vmul.f32 %v387, %v387
        %v404 = vmul.f32 %v388, %v388
        %v405 = vmul.f32 %v389, %v389
        %v406 = vmul.f32 %v390, %v390
        %v407 = vmul.f32 %v391, %v391
        %v408 = vmul.f32 %v392, %v392
        %v409 = vmul.f32 %v393, %v393
        %vm410 = vcmask 64512
        %v411 = vsel %vm410, %v394, 0.0
        %412 = vadd.xlane.f32.xlu0 %v411
        %v413 = vpop.xlane.xlu0 %412
        %v414 = vsel %vm410, %v395, 0.0
        %415 = vadd.xlane.f32.xlu0 %v414
        %v416 = vpop.xlane.xlu0 %415
        %v417 = vsel %vm410, %v396, 0.0
        %418 = vadd.xlane.f32.xlu0 %v417
        %v419 = vpop.xlane.xlu0 %418
        %v420 = vsel %vm410, %v397, 0.0
        %421 = vadd.xlane.f32.xlu0 %v420
        %v422 = vpop.xlane.xlu0 %421
        %v423 = vsel %vm410, %v398, 0.0
        %424 = vadd.xlane.f32.xlu0 %v423
        %v425 = vpop.xlane.xlu0 %424
        %v426 = vsel %vm410, %v399, 0.0
        %427 = vadd.xlane.f32.xlu0 %v426
        %v428 = vpop.xlane.xlu0 %427
        %v429 = vsel %vm410, %v400, 0.0
        %430 = vadd.xlane.f32.xlu0 %v429
        %v431 = vpop.xlane.xlu0 %430
        %v432 = vsel %vm410, %v401, 0.0
        %433 = vadd.xlane.f32.xlu0 %v432
        %v434 = vpop.xlane.xlu0 %433
        %v435 = vsel %vm410, %v402, 0.0
        %436 = vadd.xlane.f32.xlu0 %v435
        %v437 = vpop.xlane.xlu0 %436
        %v438 = vsel %vm410, %v403, 0.0
        %439 = vadd.xlane.f32.xlu0 %v438
        %v440 = vpop.xlane.xlu0 %439
        %v441 = vsel %vm410, %v404, 0.0
        %442 = vadd.xlane.f32.xlu0 %v441
        %v443 = vpop.xlane.xlu0 %442
        %v444 = vsel %vm410, %v405, 0.0
        %445 = vadd.xlane.f32.xlu0 %v444
        %v446 = vpop.xlane.xlu0 %445
        %v447 = vsel %vm410, %v406, 0.0
        %448 = vadd.xlane.f32.xlu0 %v447
        %v449 = vpop.xlane.xlu0 %448
        %v450 = vsel %vm410, %v407, 0.0
        %451 = vadd.xlane.f32.xlu0 %v450
        %v452 = vpop.xlane.xlu0 %451
        %v453 = vsel %vm410, %v408, 0.0
        %454 = vadd.xlane.f32.xlu0 %v453
        %v455 = vpop.xlane.xlu0 %454
        %v456 = vsel %vm410, %v409, 0.0
        %457 = vadd.xlane.f32.xlu0 %v456
        %v458 = vpop.xlane.xlu0 %457
        %v459 = vmax.f32 %v413, 1e-24
        %v460 = vmax.f32 %v416, 1e-24
        %v461 = vmax.f32 %v419, 1e-24
        %v462 = vmax.f32 %v422, 1e-24
        %v463 = vmax.f32 %v425, 1e-24
        %v464 = vmax.f32 %v428, 1e-24
        %v465 = vmax.f32 %v431, 1e-24
        %v466 = vmax.f32 %v434, 1e-24
        %v467 = vmax.f32 %v437, 1e-24
        %v468 = vmax.f32 %v440, 1e-24
        %v469 = vmax.f32 %v443, 1e-24
        %v470 = vmax.f32 %v446, 1e-24
        %v471 = vmax.f32 %v449, 1e-24
        %v472 = vmax.f32 %v452, 1e-24
        %v473 = vmax.f32 %v455, 1e-24
        %v474 = vmax.f32 %v458, 1e-24
        %v475 = vrsqrt.pop %v459
        %v476 = vrsqrt.pop %v460
        %v477 = vrsqrt.pop %v461
        %v478 = vrsqrt.pop %v462
        %v479 = vrsqrt.pop %v463
        %v480 = vrsqrt.pop %v464
        %v481 = vrsqrt.pop %v465
        %v482 = vrsqrt.pop %v466
        %v483 = vrsqrt.pop %v467
        %v484 = vrsqrt.pop %v468
        %v485 = vrsqrt.pop %v469
        %v486 = vrsqrt.pop %v470
        %v487 = vrsqrt.pop %v471
        %v488 = vrsqrt.pop %v472
        %v489 = vrsqrt.pop %v473
        %v490 = vrsqrt.pop %v474
        %v491 = vmul.f32 %v378, %v475
        %v492 = vmul.f32 %v379, %v476
        %v493 = vmul.f32 %v380, %v477
        %v494 = vmul.f32 %v381, %v478
        %v495 = vmul.f32 %v382, %v479
        %v496 = vmul.f32 %v383, %v480
        %v497 = vmul.f32 %v384, %v481
        %v498 = vmul.f32 %v385, %v482
        %v499 = vmul.f32 %v386, %v483
        %v500 = vmul.f32 %v387, %v484
        %v501 = vmul.f32 %v388, %v485
        %v502 = vmul.f32 %v389, %v486
        %v503 = vmul.f32 %v390, %v487
        %v504 = vmul.f32 %v391, %v488
        %v505 = vmul.f32 %v392, %v489
        %v506 = vmul.f32 %v393, %v490
        %v507 = vld [vmem:[%s3] sm:$0xff]
        %v508 = vlaneseq
        %v509 = vshrl.u32 %v508, 7
        %v510 = vsub.s32 0, %v509
        %v511 = vrot.slane %v323, %v510
        %v513 = vsel %vm410, %v491, 0
        %v516 = vsel %vm410, %v492, 0
        %v519 = vsel %vm410, %v493, 0
        %v522 = vsel %vm410, %v494, 0
        %v525 = vsel %vm410, %v495, 0
        %v528 = vsel %vm410, %v496, 0
        %v531 = vsel %vm410, %v497, 0
        %v534 = vsel %vm410, %v498, 0
        %v537 = vsel %vm410, %v499, 0
        %v540 = vsel %vm410, %v500, 0
        %v543 = vsel %vm410, %v501, 0
        %v546 = vsel %vm410, %v502, 0
        %v549 = vsel %vm410, %v503, 0
        %v552 = vsel %vm410, %v504, 0
        %v555 = vsel %vm410, %v505, 0
        %v558 = vsel %vm410, %v506, 0
        %560 = vmatprep.subr.mxu0 0.0
        %561 = vmatpush1.msra.mxu0 %v507
        %562 = vmatprep.subr.mxu0 0.0
        %563 = vmatpush1.msra.mxu0 0.0
        %564 = vmatprep.subr.mxu0 0.0
        %565 = vmatpush1.msra.mxu0 0.0
        %566 = vmatprep.subr.mxu0 0.0
        %567 = vmatpush1.msra.mxu0 0.0
        %568 = vmatprep.subr.mxu0 0.0
        %569 = vmatpush1.msra.mxu0 0.0
        %570 = vmatprep.subr.mxu0 0.0
        %571 = vmatpush1.msra.mxu0 0.0
        %572 = vmatprep.subr.mxu0 0.0
        %573 = vmatpush1.msra.mxu0 0.0
        %574 = vmatprep.subr.mxu0 0.0
        %575 = vmatpush1.msra.mxu0 0.0
        %576 = vmatprep.subr.mxu0 0.0
        %577 = vmatpush1.msra.mxu0 0.0
        %578 = vmatprep.subr.mxu0 0.0
        %579 = vmatpush1.msra.mxu0 0.0
        %580 = vmatprep.subr.mxu0 0.0
        %581 = vmatpush1.msra.mxu0 0.0
        %582 = vmatprep.subr.mxu0 0.0
        %583 = vmatpush1.msra.mxu0 0.0
        %584 = vmatprep.subr.mxu0 0.0
        %585 = vmatpush1.msra.mxu0 0.0
        %586 = vmatprep.subr.mxu0 0.0
        %587 = vmatpush1.msra.mxu0 0.0
        %588 = vmatprep.subr.mxu0 0.0
        %589 = vmatpush1.msra.mxu0 0.0
        %590 = vmatprep.subr.mxu0 0.0
        %591 = vmatpush1.msra.mxu0 0.0
        %592 = vmatprep.subr.mxu0 0.0
        %593 = vmatpush1.msra.mxu0 0.0
        %594 = vmatprep.subr.mxu0 0.0
        %595 = vmatpush1.msra.mxu0 0.0
        %596 = vmatprep.subr.mxu0 0.0
        %597 = vmatpush1.msra.mxu0 0.0
        %598 = vmatprep.subr.mxu0 0.0
        %599 = vmatpush1.msra.mxu0 0.0
        %600 = vmatprep.subr.mxu0 0.0
        %601 = vmatpush1.msra.mxu0 0.0
        %602 = vmatprep.subr.mxu0 0.0
        %603 = vmatpush1.msra.mxu0 0.0
        %604 = vmatprep.subr.mxu0 0.0
        %605 = vmatpush1.msra.mxu0 0.0
        %606 = vmatprep.subr.mxu0 0.0
        %607 = vmatpush1.msra.mxu0 0.0
        %608 = vmatprep.subr.mxu0 0.0
        %609 = vmatpush1.msra.mxu0 0.0
        %610 = vmatprep.subr.mxu0 0.0
        %611 = vmatpush1.msra.mxu0 0.0
        %612 = vmatprep.subr.mxu0 0.0
        %613 = vmatpush1.msra.mxu0 0.0
        %614 = vmatprep.subr.mxu0 0.0
        %615 = vmatpush1.msra.mxu0 0.0
        %616 = vmatprep.subr.mxu0 0.0
        %617 = vmatpush1.msra.mxu0 0.0
        %618 = vmatprep.subr.mxu0 0.0
        %619 = vmatpush1.msra.mxu0 0.0
        %620 = vmatprep.subr.mxu0 0.0
        %621 = vmatpush1.msra.mxu0 0.0
        %622 = vmatprep.subr.mxu0 0.0
        %623 = vmatpush1.msra.mxu0 0.0
        %624 = vmatprep.mubr.f32.mxu0 0.0
        %625 = vmatmul.mubr.f32.gmra.mrb[0].mxu0 %v513
        %v626 = vpop.f32.mrb[0].mxu0
        %v627 = vadd.f32 %v511, %v626
        %v628 = vpop.f32.mrb[0].mxu0
        %629 = vmatprep.mubr.f32.mxu0 0.0
        %630 = vmatmul.mubr.f32.gmra.mrb[0].mxu0 %v516
        %v631 = vpop.f32.mrb[0].mxu0
        %v632 = vadd.f32 %v511, %v631
        %v633 = vpop.f32.mrb[0].mxu0
        %634 = vmatprep.mubr.f32.mxu0 0.0
        %635 = vmatmul.mubr.f32.gmra.mrb[0].mxu0 %v519
        %v636 = vpop.f32.mrb[0].mxu0
        %v637 = vadd.f32 %v511, %v636
        %v638 = vpop.f32.mrb[0].mxu0
        %639 = vmatprep.mubr.f32.mxu0 0.0
        %640 = vmatmul.mubr.f32.gmra.mrb[0].mxu0 %v522
        %v641 = vpop.f32.mrb[0].mxu0
        %v642 = vadd.f32 %v511, %v641
        %v643 = vpop.f32.mrb[0].mxu0
        %644 = vmatprep.mubr.f32.mxu0 0.0
        %645 = vmatmul.mubr.f32.gmra.mrb[0].mxu0 %v525
        %v646 = vpop.f32.mrb[0].mxu0
        %v647 = vadd.f32 %v511, %v646
        %v648 = vpop.f32.mrb[0].mxu0
        %649 = vmatprep.mubr.f32.mxu0 0.0
        %650 = vmatmul.mubr.f32.gmra.mrb[0].mxu0 %v528
        %v651 = vpop.f32.mrb[0].mxu0
        %v652 = vadd.f32 %v511, %v651
        %v653 = vpop.f32.mrb[0].mxu0
        %654 = vmatprep.mubr.f32.mxu0 0.0
        %655 = vmatmul.mubr.f32.gmra.mrb[0].mxu0 %v531
        %v656 = vpop.f32.mrb[0].mxu0
        %v657 = vadd.f32 %v511, %v656
        %v658 = vpop.f32.mrb[0].mxu0
        %659 = vmatprep.mubr.f32.mxu0 0.0
        %660 = vmatmul.mubr.f32.gmra.mrb[0].mxu0 %v534
        %v661 = vpop.f32.mrb[0].mxu0
        %v662 = vadd.f32 %v511, %v661
        %v663 = vpop.f32.mrb[0].mxu0
        %664 = vmatprep.mubr.f32.mxu0 0.0
        %665 = vmatmul.mubr.f32.gmra.mrb[0].mxu0 %v537
        %v666 = vpop.f32.mrb[0].mxu0
        %v667 = vadd.f32 %v511, %v666
        %v668 = vpop.f32.mrb[0].mxu0
        %669 = vmatprep.mubr.f32.mxu0 0.0
        %670 = vmatmul.mubr.f32.gmra.mrb[0].mxu0 %v540
        %v671 = vpop.f32.mrb[0].mxu0
        %v672 = vadd.f32 %v511, %v671
        %v673 = vpop.f32.mrb[0].mxu0
        %674 = vmatprep.mubr.f32.mxu0 0.0
        %675 = vmatmul.mubr.f32.gmra.mrb[0].mxu0 %v543
        %v676 = vpop.f32.mrb[0].mxu0
        %v677 = vadd.f32 %v511, %v676
        %v678 = vpop.f32.mrb[0].mxu0
        %679 = vmatprep.mubr.f32.mxu0 0.0
        %680 = vmatmul.mubr.f32.gmra.mrb[0].mxu0 %v546
        %v681 = vpop.f32.mrb[0].mxu0
        %v682 = vadd.f32 %v511, %v681
        %v683 = vpop.f32.mrb[0].mxu0
        %684 = vmatprep.mubr.f32.mxu0 0.0
        %685 = vmatmul.mubr.f32.gmra.mrb[0].mxu0 %v549
        %v686 = vpop.f32.mrb[0].mxu0
        %v687 = vadd.f32 %v511, %v686
        %v688 = vpop.f32.mrb[0].mxu0
        %689 = vmatprep.mubr.f32.mxu0 0.0
        %690 = vmatmul.mubr.f32.gmra.mrb[0].mxu0 %v552
        %v691 = vpop.f32.mrb[0].mxu0
        %v692 = vadd.f32 %v511, %v691
        %v693 = vpop.f32.mrb[0].mxu0
        %694 = vmatprep.mubr.f32.mxu0 0.0
        %695 = vmatmul.mubr.f32.gmra.mrb[0].mxu0 %v555
        %v696 = vpop.f32.mrb[0].mxu0
        %v697 = vadd.f32 %v511, %v696
        %v698 = vpop.f32.mrb[0].mxu0
        %699 = vmatprep.mubr.f32.mxu0 0.0
        %700 = vmatmul.mubr.f32.gmra.mrb[0].mxu0 %v558
        %v701 = vpop.f32.mrb[0].mxu0
        %v702 = vadd.f32 %v511, %v701
        %v703 = vpop.f32.mrb[0].mxu0
        %704 = vdwg.mxu0
        %v705 = vlaneseq
        %v706 = vshrl.u32 %v705, 7
        %v707 = vsub.s32 0, %v706
        %v708 = vrot.slane %v324, %v707
        %709 = vmatprep.subr.mxu0 0.0
        %710 = vmatpush1.msra.mxu0 %v328
        %711 = vmatprep.subr.mxu0 0.0
        %712 = vmatpush1.msra.mxu0 %v329
        %713 = vmatprep.subr.mxu0 0.0
        %714 = vmatpush1.msra.mxu0 %v330
        %715 = vmatprep.subr.mxu0 0.0
        %716 = vmatpush1.msra.mxu0 %v331
        %717 = vmatprep.subr.mxu0 0.0
        %718 = vmatpush1.msra.mxu0 %v332
        %719 = vmatprep.subr.mxu0 0.0
        %720 = vmatpush1.msra.mxu0 %v333
        %721 = vmatprep.subr.mxu0 0.0
        %722 = vmatpush1.msra.mxu0 %v334
        %723 = vmatprep.subr.mxu0 0.0
        %724 = vmatpush1.msra.mxu0 %v335
        %725 = vmatprep.subr.mxu0 0.0
        %726 = vmatpush1.msra.mxu0 %v336
        %727 = vmatprep.subr.mxu0 0.0
        %728 = vmatpush1.msra.mxu0 %v337
        %729 = vmatprep.subr.mxu0 0.0
        %730 = vmatpush1.msra.mxu0 %v338
        %731 = vmatprep.subr.mxu0 0.0
        %732 = vmatpush1.msra.mxu0 %v339
        %733 = vmatprep.subr.mxu0 0.0
        %734 = vmatpush1.msra.mxu0 %v340
        %735 = vmatprep.subr.mxu0 0.0
        %736 = vmatpush1.msra.mxu0 %v341
        %737 = vmatprep.subr.mxu0 0.0
        %738 = vmatpush1.msra.mxu0 %v342
        %739 = vmatprep.subr.mxu0 0.0
        %740 = vmatpush1.msra.mxu0 %v343
        %741 = vmatprep.subr.mxu0 0.0
        %742 = vmatpush1.msra.mxu0 0.0
        %743 = vmatprep.subr.mxu0 0.0
        %744 = vmatpush1.msra.mxu0 0.0
        %745 = vmatprep.subr.mxu0 0.0
        %746 = vmatpush1.msra.mxu0 0.0
        %747 = vmatprep.subr.mxu0 0.0
        %748 = vmatpush1.msra.mxu0 0.0
        %749 = vmatprep.subr.mxu0 0.0
        %750 = vmatpush1.msra.mxu0 0.0
        %751 = vmatprep.subr.mxu0 0.0
        %752 = vmatpush1.msra.mxu0 0.0
        %753 = vmatprep.subr.mxu0 0.0
        %754 = vmatpush1.msra.mxu0 0.0
        %755 = vmatprep.subr.mxu0 0.0
        %756 = vmatpush1.msra.mxu0 0.0
        %757 = vmatprep.subr.mxu0 0.0
        %758 = vmatpush1.msra.mxu0 0.0
        %759 = vmatprep.subr.mxu0 0.0
        %760 = vmatpush1.msra.mxu0 0.0
        %761 = vmatprep.subr.mxu0 0.0
        %762 = vmatpush1.msra.mxu0 0.0
        %763 = vmatprep.subr.mxu0 0.0
        %764 = vmatpush1.msra.mxu0 0.0
        %765 = vmatprep.subr.mxu0 0.0
        %766 = vmatpush1.msra.mxu0 0.0
        %767 = vmatprep.subr.mxu0 0.0
        %768 = vmatpush1.msra.mxu0 0.0
        %769 = vmatprep.subr.mxu0 0.0
        %770 = vmatpush1.msra.mxu0 0.0
        %771 = vmatprep.subr.mxu0 0.0
        %772 = vmatpush1.msra.mxu0 0.0
        %773 = vmatprep.mubr.f32.mxu0 0.0
        %774 = vmatmul.mubr.f32.gmra.mrb[0].mxu0 %v627
        %v775 = vpop.f32.mrb[0].mxu0
        %v776 = vadd.f32 %v708, %v775
        %v777 = vpop.f32.mrb[0].mxu0
        %778 = vmatprep.mubr.f32.mxu0 0.0
        %779 = vmatmul.mubr.f32.gmra.mrb[0].mxu0 %v632
        %v780 = vpop.f32.mrb[0].mxu0
        %v781 = vadd.f32 %v708, %v780
        %v782 = vpop.f32.mrb[0].mxu0
        %783 = vmatprep.mubr.f32.mxu0 0.0
        %784 = vmatmul.mubr.f32.gmra.mrb[0].mxu0 %v637
        %v785 = vpop.f32.mrb[0].mxu0
        %v786 = vadd.f32 %v708, %v785
        %v787 = vpop.f32.mrb[0].mxu0
        %788 = vmatprep.mubr.f32.mxu0 0.0
        %789 = vmatmul.mubr.f32.gmra.mrb[0].mxu0 %v642
        %v790 = vpop.f32.mrb[0].mxu0
        %v791 = vadd.f32 %v708, %v790
        %v792 = vpop.f32.mrb[0].mxu0
        %793 = vmatprep.mubr.f32.mxu0 0.0
        %794 = vmatmul.mubr.f32.gmra.mrb[0].mxu0 %v647
        %v795 = vpop.f32.mrb[0].mxu0
        %v796 = vadd.f32 %v708, %v795
        %v797 = vpop.f32.mrb[0].mxu0
        %798 = vmatprep.mubr.f32.mxu0 0.0
        %799 = vmatmul.mubr.f32.gmra.mrb[0].mxu0 %v652
        %v800 = vpop.f32.mrb[0].mxu0
        %v801 = vadd.f32 %v708, %v800
        %v802 = vpop.f32.mrb[0].mxu0
        %803 = vmatprep.mubr.f32.mxu0 0.0
        %804 = vmatmul.mubr.f32.gmra.mrb[0].mxu0 %v657
        %v805 = vpop.f32.mrb[0].mxu0
        %v806 = vadd.f32 %v708, %v805
        %v807 = vpop.f32.mrb[0].mxu0
        %808 = vmatprep.mubr.f32.mxu0 0.0
        %809 = vmatmul.mubr.f32.gmra.mrb[0].mxu0 %v662
        %v810 = vpop.f32.mrb[0].mxu0
        %v811 = vadd.f32 %v708, %v810
        %v812 = vpop.f32.mrb[0].mxu0
        %813 = vmatprep.mubr.f32.mxu0 0.0
        %814 = vmatmul.mubr.f32.gmra.mrb[0].mxu0 %v667
        %v815 = vpop.f32.mrb[0].mxu0
        %v816 = vadd.f32 %v708, %v815
        %v817 = vpop.f32.mrb[0].mxu0
        %818 = vmatprep.mubr.f32.mxu0 0.0
        %819 = vmatmul.mubr.f32.gmra.mrb[0].mxu0 %v672
        %v820 = vpop.f32.mrb[0].mxu0
        %v821 = vadd.f32 %v708, %v820
        %v822 = vpop.f32.mrb[0].mxu0
        %823 = vmatprep.mubr.f32.mxu0 0.0
        %824 = vmatmul.mubr.f32.gmra.mrb[0].mxu0 %v677
        %v825 = vpop.f32.mrb[0].mxu0
        %v826 = vadd.f32 %v708, %v825
        %v827 = vpop.f32.mrb[0].mxu0
        %828 = vmatprep.mubr.f32.mxu0 0.0
        %829 = vmatmul.mubr.f32.gmra.mrb[0].mxu0 %v682
        %v830 = vpop.f32.mrb[0].mxu0
        %v831 = vadd.f32 %v708, %v830
        %v832 = vpop.f32.mrb[0].mxu0
        %833 = vmatprep.mubr.f32.mxu0 0.0
        %834 = vmatmul.mubr.f32.gmra.mrb[0].mxu0 %v687
        %v835 = vpop.f32.mrb[0].mxu0
        %v836 = vadd.f32 %v708, %v835
        %v837 = vpop.f32.mrb[0].mxu0
        %838 = vmatprep.mubr.f32.mxu0 0.0
        %839 = vmatmul.mubr.f32.gmra.mrb[0].mxu0 %v692
        %v840 = vpop.f32.mrb[0].mxu0
        %v841 = vadd.f32 %v708, %v840
        %v842 = vpop.f32.mrb[0].mxu0
        %843 = vmatprep.mubr.f32.mxu0 0.0
        %844 = vmatmul.mubr.f32.gmra.mrb[0].mxu0 %v697
        %v845 = vpop.f32.mrb[0].mxu0
        %v846 = vadd.f32 %v708, %v845
        %v847 = vpop.f32.mrb[0].mxu0
        %848 = vmatprep.mubr.f32.mxu0 0.0
        %849 = vmatmul.mubr.f32.gmra.mrb[0].mxu0 %v702
        %v850 = vpop.f32.mrb[0].mxu0
        %v851 = vadd.f32 %v708, %v850
        %v852 = vpop.f32.mrb[0].mxu0
        %853 = vdwg.mxu0
        %v854 = vmax.f32 %v776, 0.0
        %v855 = vmax.f32 %v781, 0.0
        %v856 = vmax.f32 %v786, 0.0
        %v857 = vmax.f32 %v791, 0.0
        %v858 = vmax.f32 %v796, 0.0
        %v859 = vmax.f32 %v801, 0.0
        %v860 = vmax.f32 %v806, 0.0
        %v861 = vmax.f32 %v811, 0.0
        %v862 = vmax.f32 %v816, 0.0
        %v863 = vmax.f32 %v821, 0.0
        %v864 = vmax.f32 %v826, 0.0
        %v865 = vmax.f32 %v831, 0.0
        %v866 = vmax.f32 %v836, 0.0
        %v867 = vmax.f32 %v841, 0.0
        %v868 = vmax.f32 %v846, 0.0
        %v869 = vmax.f32 %v851, 0.0
        %v870 = vlaneseq
        %v871 = vshrl.u32 %v870, 7
        %v872 = vsub.s32 0, %v871
        %v873 = vrot.slane %v325, %v872
        %874 = vmatprep.subr.mxu0 0.0
        %875 = vmatpush1.msra.mxu0 %v345
        %876 = vmatprep.subr.mxu0 0.0
        %877 = vmatpush1.msra.mxu0 %v346
        %878 = vmatprep.subr.mxu0 0.0
        %879 = vmatpush1.msra.mxu0 %v347
        %880 = vmatprep.subr.mxu0 0.0
        %881 = vmatpush1.msra.mxu0 %v348
        %882 = vmatprep.subr.mxu0 0.0
        %883 = vmatpush1.msra.mxu0 %v349
        %884 = vmatprep.subr.mxu0 0.0
        %885 = vmatpush1.msra.mxu0 %v350
        %886 = vmatprep.subr.mxu0 0.0
        %887 = vmatpush1.msra.mxu0 %v351
        %888 = vmatprep.subr.mxu0 0.0
        %889 = vmatpush1.msra.mxu0 %v352
        %890 = vmatprep.subr.mxu0 0.0
        %891 = vmatpush1.msra.mxu0 %v353
        %892 = vmatprep.subr.mxu0 0.0
        %893 = vmatpush1.msra.mxu0 %v354
        %894 = vmatprep.subr.mxu0 0.0
        %895 = vmatpush1.msra.mxu0 %v355
        %896 = vmatprep.subr.mxu0 0.0
        %897 = vmatpush1.msra.mxu0 %v356
        %898 = vmatprep.subr.mxu0 0.0
        %899 = vmatpush1.msra.mxu0 %v357
        %900 = vmatprep.subr.mxu0 0.0
        %901 = vmatpush1.msra.mxu0 %v358
        %902 = vmatprep.subr.mxu0 0.0
        %903 = vmatpush1.msra.mxu0 %v359
        %904 = vmatprep.subr.mxu0 0.0
        %905 = vmatpush1.msra.mxu0 %v360
        %906 = vmatprep.subr.mxu0 0.0
        %907 = vmatpush1.msra.mxu0 0.0
        %908 = vmatprep.subr.mxu0 0.0
        %909 = vmatpush1.msra.mxu0 0.0
        %910 = vmatprep.subr.mxu0 0.0
        %911 = vmatpush1.msra.mxu0 0.0
        %912 = vmatprep.subr.mxu0 0.0
        %913 = vmatpush1.msra.mxu0 0.0
        %914 = vmatprep.subr.mxu0 0.0
        %915 = vmatpush1.msra.mxu0 0.0
        %916 = vmatprep.subr.mxu0 0.0
        %917 = vmatpush1.msra.mxu0 0.0
        %918 = vmatprep.subr.mxu0 0.0
        %919 = vmatpush1.msra.mxu0 0.0
        %920 = vmatprep.subr.mxu0 0.0
        %921 = vmatpush1.msra.mxu0 0.0
        %922 = vmatprep.subr.mxu0 0.0
        %923 = vmatpush1.msra.mxu0 0.0
        %924 = vmatprep.subr.mxu0 0.0
        %925 = vmatpush1.msra.mxu0 0.0
        %926 = vmatprep.subr.mxu0 0.0
        %927 = vmatpush1.msra.mxu0 0.0
        %928 = vmatprep.subr.mxu0 0.0
        %929 = vmatpush1.msra.mxu0 0.0
        %930 = vmatprep.subr.mxu0 0.0
        %931 = vmatpush1.msra.mxu0 0.0
        %932 = vmatprep.subr.mxu0 0.0
        %933 = vmatpush1.msra.mxu0 0.0
        %934 = vmatprep.subr.mxu0 0.0
        %935 = vmatpush1.msra.mxu0 0.0
        %936 = vmatprep.subr.mxu0 0.0
        %937 = vmatpush1.msra.mxu0 0.0
        %938 = vmatprep.mubr.f32.mxu0 0.0
        %939 = vmatmul.mubr.f32.gmra.mrb[0].mxu0 %v854
        %v940 = vpop.f32.mrb[0].mxu0
        %v941 = vadd.f32 %v873, %v940
        %v942 = vpop.f32.mrb[0].mxu0
        %943 = vmatprep.mubr.f32.mxu0 0.0
        %944 = vmatmul.mubr.f32.gmra.mrb[0].mxu0 %v855
        %v945 = vpop.f32.mrb[0].mxu0
        %v946 = vadd.f32 %v873, %v945
        %v947 = vpop.f32.mrb[0].mxu0
        %948 = vmatprep.mubr.f32.mxu0 0.0
        %949 = vmatmul.mubr.f32.gmra.mrb[0].mxu0 %v856
        %v950 = vpop.f32.mrb[0].mxu0
        %v951 = vadd.f32 %v873, %v950
        %v952 = vpop.f32.mrb[0].mxu0
        %953 = vmatprep.mubr.f32.mxu0 0.0
        %954 = vmatmul.mubr.f32.gmra.mrb[0].mxu0 %v857
        %v955 = vpop.f32.mrb[0].mxu0
        %v956 = vadd.f32 %v873, %v955
        %v957 = vpop.f32.mrb[0].mxu0
        %958 = vmatprep.mubr.f32.mxu0 0.0
        %959 = vmatmul.mubr.f32.gmra.mrb[0].mxu0 %v858
        %v960 = vpop.f32.mrb[0].mxu0
        %v961 = vadd.f32 %v873, %v960
        %v962 = vpop.f32.mrb[0].mxu0
        %963 = vmatprep.mubr.f32.mxu0 0.0
        %964 = vmatmul.mubr.f32.gmra.mrb[0].mxu0 %v859
        %v965 = vpop.f32.mrb[0].mxu0
        %v966 = vadd.f32 %v873, %v965
        %v967 = vpop.f32.mrb[0].mxu0
        %968 = vmatprep.mubr.f32.mxu0 0.0
        %969 = vmatmul.mubr.f32.gmra.mrb[0].mxu0 %v860
        %v970 = vpop.f32.mrb[0].mxu0
        %v971 = vadd.f32 %v873, %v970
        %v972 = vpop.f32.mrb[0].mxu0
        %973 = vmatprep.mubr.f32.mxu0 0.0
        %974 = vmatmul.mubr.f32.gmra.mrb[0].mxu0 %v861
        %v975 = vpop.f32.mrb[0].mxu0
        %v976 = vadd.f32 %v873, %v975
        %v977 = vpop.f32.mrb[0].mxu0
        %978 = vmatprep.mubr.f32.mxu0 0.0
        %979 = vmatmul.mubr.f32.gmra.mrb[0].mxu0 %v862
        %v980 = vpop.f32.mrb[0].mxu0
        %v981 = vadd.f32 %v873, %v980
        %v982 = vpop.f32.mrb[0].mxu0
        %983 = vmatprep.mubr.f32.mxu0 0.0
        %984 = vmatmul.mubr.f32.gmra.mrb[0].mxu0 %v863
        %v985 = vpop.f32.mrb[0].mxu0
        %v986 = vadd.f32 %v873, %v985
        %v987 = vpop.f32.mrb[0].mxu0
        %988 = vmatprep.mubr.f32.mxu0 0.0
        %989 = vmatmul.mubr.f32.gmra.mrb[0].mxu0 %v864
        %v990 = vpop.f32.mrb[0].mxu0
        %v991 = vadd.f32 %v873, %v990
        %v992 = vpop.f32.mrb[0].mxu0
        %993 = vmatprep.mubr.f32.mxu0 0.0
        %994 = vmatmul.mubr.f32.gmra.mrb[0].mxu0 %v865
        %v995 = vpop.f32.mrb[0].mxu0
        %v996 = vadd.f32 %v873, %v995
        %v997 = vpop.f32.mrb[0].mxu0
        %998 = vmatprep.mubr.f32.mxu0 0.0
        %999 = vmatmul.mubr.f32.gmra.mrb[0].mxu0 %v866
        %v1000 = vpop.f32.mrb[0].mxu0
        %v1001 = vadd.f32 %v873, %v1000
        %v1002 = vpop.f32.mrb[0].mxu0
        %1003 = vmatprep.mubr.f32.mxu0 0.0
        %1004 = vmatmul.mubr.f32.gmra.mrb[0].mxu0 %v867
        %v1005 = vpop.f32.mrb[0].mxu0
        %v1006 = vadd.f32 %v873, %v1005
        %v1007 = vpop.f32.mrb[0].mxu0
        %1008 = vmatprep.mubr.f32.mxu0 0.0
        %1009 = vmatmul.mubr.f32.gmra.mrb[0].mxu0 %v868
        %v1010 = vpop.f32.mrb[0].mxu0
        %v1011 = vadd.f32 %v873, %v1010
        %v1012 = vpop.f32.mrb[0].mxu0
        %1013 = vmatprep.mubr.f32.mxu0 0.0
        %1014 = vmatmul.mubr.f32.gmra.mrb[0].mxu0 %v869
        %v1015 = vpop.f32.mrb[0].mxu0
        %v1016 = vadd.f32 %v873, %v1015
        %v1017 = vpop.f32.mrb[0].mxu0
        %1018 = vdwg.mxu0
        %v1019 = vmul.f32 %v941, %v941
        %v1020 = vmul.f32 %v946, %v946
        %v1021 = vmul.f32 %v951, %v951
        %v1022 = vmul.f32 %v956, %v956
        %v1023 = vmul.f32 %v961, %v961
        %v1024 = vmul.f32 %v966, %v966
        %v1025 = vmul.f32 %v971, %v971
        %v1026 = vmul.f32 %v976, %v976
        %v1027 = vmul.f32 %v981, %v981
        %v1028 = vmul.f32 %v986, %v986
        %v1029 = vmul.f32 %v991, %v991
        %v1030 = vmul.f32 %v996, %v996
        %v1031 = vmul.f32 %v1001, %v1001
        %v1032 = vmul.f32 %v1006, %v1006
        %v1033 = vmul.f32 %v1011, %v1011
        %v1034 = vmul.f32 %v1016, %v1016
        %1035 = vadd.xlane.f32.xlu0 %v1019
        %v1036 = vpop.xlane.xlu0 %1035
        %1037 = vadd.xlane.f32.xlu0 %v1020
        %v1038 = vpop.xlane.xlu0 %1037
        %1039 = vadd.xlane.f32.xlu0 %v1021
        %v1040 = vpop.xlane.xlu0 %1039
        %1041 = vadd.xlane.f32.xlu0 %v1022
        %v1042 = vpop.xlane.xlu0 %1041
        %1043 = vadd.xlane.f32.xlu0 %v1023
        %v1044 = vpop.xlane.xlu0 %1043
        %1045 = vadd.xlane.f32.xlu0 %v1024
        %v1046 = vpop.xlane.xlu0 %1045
        %1047 = vadd.xlane.f32.xlu0 %v1025
        %v1048 = vpop.xlane.xlu0 %1047
        %1049 = vadd.xlane.f32.xlu0 %v1026
        %v1050 = vpop.xlane.xlu0 %1049
        %1051 = vadd.xlane.f32.xlu0 %v1027
        %v1052 = vpop.xlane.xlu0 %1051
        %1053 = vadd.xlane.f32.xlu0 %v1028
        %v1054 = vpop.xlane.xlu0 %1053
        %1055 = vadd.xlane.f32.xlu0 %v1029
        %v1056 = vpop.xlane.xlu0 %1055
        %1057 = vadd.xlane.f32.xlu0 %v1030
        %v1058 = vpop.xlane.xlu0 %1057
        %1059 = vadd.xlane.f32.xlu0 %v1031
        %v1060 = vpop.xlane.xlu0 %1059
        %1061 = vadd.xlane.f32.xlu0 %v1032
        %v1062 = vpop.xlane.xlu0 %1061
        %1063 = vadd.xlane.f32.xlu0 %v1033
        %v1064 = vpop.xlane.xlu0 %1063
        %1065 = vadd.xlane.f32.xlu0 %v1034
        %v1066 = vpop.xlane.xlu0 %1065
        %v1067 = vmax.f32 %v1036, 1e-24
        %v1068 = vmax.f32 %v1038, 1e-24
        %v1069 = vmax.f32 %v1040, 1e-24
        %v1070 = vmax.f32 %v1042, 1e-24
        %v1071 = vmax.f32 %v1044, 1e-24
        %v1072 = vmax.f32 %v1046, 1e-24
        %v1073 = vmax.f32 %v1048, 1e-24
        %v1074 = vmax.f32 %v1050, 1e-24
        %v1075 = vmax.f32 %v1052, 1e-24
        %v1076 = vmax.f32 %v1054, 1e-24
        %v1077 = vmax.f32 %v1056, 1e-24
        %v1078 = vmax.f32 %v1058, 1e-24
        %v1079 = vmax.f32 %v1060, 1e-24
        %v1080 = vmax.f32 %v1062, 1e-24
        %v1081 = vmax.f32 %v1064, 1e-24
        %v1082 = vmax.f32 %v1066, 1e-24
        %v1083 = vrsqrt.pop %v1067
        %v1084 = vrsqrt.pop %v1068
        %v1085 = vrsqrt.pop %v1069
        %v1086 = vrsqrt.pop %v1070
        %v1087 = vrsqrt.pop %v1071
        %v1088 = vrsqrt.pop %v1072
        %v1089 = vrsqrt.pop %v1073
        %v1090 = vrsqrt.pop %v1074
        %v1091 = vrsqrt.pop %v1075
        %v1092 = vrsqrt.pop %v1076
        %v1093 = vrsqrt.pop %v1077
        %v1094 = vrsqrt.pop %v1078
        %v1095 = vrsqrt.pop %v1079
        %v1096 = vrsqrt.pop %v1080
        %v1097 = vrsqrt.pop %v1081
        %v1098 = vrsqrt.pop %v1082
        %v1099 = vmul.f32 %v941, %v1083
        %v1100 = vmul.f32 %v946, %v1084
        %v1101 = vmul.f32 %v951, %v1085
        %v1102 = vmul.f32 %v956, %v1086
        %v1103 = vmul.f32 %v961, %v1087
        %v1104 = vmul.f32 %v966, %v1088
        %v1105 = vmul.f32 %v971, %v1089
        %v1106 = vmul.f32 %v976, %v1090
        %v1107 = vmul.f32 %v981, %v1091
        %v1108 = vmul.f32 %v986, %v1092
        %v1109 = vmul.f32 %v991, %v1093
        %v1110 = vmul.f32 %v996, %v1094
        %v1111 = vmul.f32 %v1001, %v1095
        %v1112 = vmul.f32 %v1006, %v1096
        %v1113 = vmul.f32 %v1011, %v1097
        %v1114 = vmul.f32 %v1016, %v1098
        %v1115 = vld [vmem:[%s319] sm:$0xff]
        %v1116 = vld [vmem:[%s4] sm:$0xff]
        %v1117 = vld [vmem:[%s4 + $0x8] sm:$0xff]
        %v1118 = vld [vmem:[%s4 + $0x10] sm:$0xff]
        %v1119 = vld [vmem:[%s4 + $0x18] sm:$0xff]
        %v1120 = vld [vmem:[%s4 + $0x20] sm:$0xff]
        %v1121 = vld [vmem:[%s4 + $0x28] sm:$0xff]
        %v1122 = vld [vmem:[%s4 + $0x30] sm:$0xff]
        %v1123 = vld [vmem:[%s4 + $0x38] sm:$0xff]
        %v1124 = vld [vmem:[%s4 + $0x40] sm:$0xff]
        %v1125 = vld [vmem:[%s4 + $0x48] sm:$0xff]
        %v1126 = vld [vmem:[%s4 + $0x50] sm:$0xff]
        %v1127 = vld [vmem:[%s4 + $0x58] sm:$0xff]
        %v1128 = vld [vmem:[%s4 + $0x60] sm:$0xff]
        %v1129 = vld [vmem:[%s4 + $0x68] sm:$0xff]
        %v1130 = vld [vmem:[%s4 + $0x70] sm:$0xff]
        %v1131 = vld [vmem:[%s4 + $0x78] sm:$0xff]
        %v1132 = vlaneseq
        %v1133 = vshrl.u32 %v1132, 7
        %v1134 = vsub.s32 0, %v1133
        %v1135 = vrot.slane %v326, %v1134
        %1136 = vmatprep.subr.mxu0 0.0
        %1137 = vmatpush1.msra.mxu0 %v1116
        %1138 = vmatprep.subr.mxu0 0.0
        %1139 = vmatpush1.msra.mxu0 %v1117
        %1140 = vmatprep.subr.mxu0 0.0
        %1141 = vmatpush1.msra.mxu0 %v1118
        %1142 = vmatprep.subr.mxu0 0.0
        %1143 = vmatpush1.msra.mxu0 %v1119
        %1144 = vmatprep.subr.mxu0 0.0
        %1145 = vmatpush1.msra.mxu0 %v1120
        %1146 = vmatprep.subr.mxu0 0.0
        %1147 = vmatpush1.msra.mxu0 %v1121
        %1148 = vmatprep.subr.mxu0 0.0
        %1149 = vmatpush1.msra.mxu0 %v1122
        %1150 = vmatprep.subr.mxu0 0.0
        %1151 = vmatpush1.msra.mxu0 %v1123
        %1152 = vmatprep.subr.mxu0 0.0
        %1153 = vmatpush1.msra.mxu0 %v1124
        %1154 = vmatprep.subr.mxu0 0.0
        %1155 = vmatpush1.msra.mxu0 %v1125
        %1156 = vmatprep.subr.mxu0 0.0
        %1157 = vmatpush1.msra.mxu0 %v1126
        %1158 = vmatprep.subr.mxu0 0.0
        %1159 = vmatpush1.msra.mxu0 %v1127
        %1160 = vmatprep.subr.mxu0 0.0
        %1161 = vmatpush1.msra.mxu0 %v1128
        %1162 = vmatprep.subr.mxu0 0.0
        %1163 = vmatpush1.msra.mxu0 %v1129
        %1164 = vmatprep.subr.mxu0 0.0
        %1165 = vmatpush1.msra.mxu0 %v1130
        %1166 = vmatprep.subr.mxu0 0.0
        %1167 = vmatpush1.msra.mxu0 %v1131
        %1168 = vmatprep.subr.mxu0 0.0
        %1169 = vmatpush1.msra.mxu0 0.0
        %1170 = vmatprep.subr.mxu0 0.0
        %1171 = vmatpush1.msra.mxu0 0.0
        %1172 = vmatprep.subr.mxu0 0.0
        %1173 = vmatpush1.msra.mxu0 0.0
        %1174 = vmatprep.subr.mxu0 0.0
        %1175 = vmatpush1.msra.mxu0 0.0
        %1176 = vmatprep.subr.mxu0 0.0
        %1177 = vmatpush1.msra.mxu0 0.0
        %1178 = vmatprep.subr.mxu0 0.0
        %1179 = vmatpush1.msra.mxu0 0.0
        %1180 = vmatprep.subr.mxu0 0.0
        %1181 = vmatpush1.msra.mxu0 0.0
        %1182 = vmatprep.subr.mxu0 0.0
        %1183 = vmatpush1.msra.mxu0 0.0
        %1184 = vmatprep.subr.mxu0 0.0
        %1185 = vmatpush1.msra.mxu0 0.0
        %1186 = vmatprep.subr.mxu0 0.0
        %1187 = vmatpush1.msra.mxu0 0.0
        %1188 = vmatprep.subr.mxu0 0.0
        %1189 = vmatpush1.msra.mxu0 0.0
        %1190 = vmatprep.subr.mxu0 0.0
        %1191 = vmatpush1.msra.mxu0 0.0
        %1192 = vmatprep.subr.mxu0 0.0
        %1193 = vmatpush1.msra.mxu0 0.0
        %1194 = vmatprep.subr.mxu0 0.0
        %1195 = vmatpush1.msra.mxu0 0.0
        %1196 = vmatprep.subr.mxu0 0.0
        %1197 = vmatpush1.msra.mxu0 0.0
        %1198 = vmatprep.subr.mxu0 0.0
        %1199 = vmatpush1.msra.mxu0 0.0
        %1200 = vmatprep.mubr.f32.mxu0 0.0
        %1201 = vmatmul.mubr.f32.gmra.mrb[0].mxu0 %v1115
        %v1202 = vpop.f32.mrb[0].mxu0
        %v1203 = vadd.f32 %v1135, %v1202
        %v1204 = vpop.f32.mrb[0].mxu0
        %1205 = vdwg.mxu0
        %v1206 = vmax.f32 %v1203, 0.0
        %v1207 = vlaneseq
        %v1208 = vshrl.u32 %v1207, 7
        %v1209 = vsub.s32 0, %v1208
        %v1210 = vrot.slane %v327, %v1209
        %1211 = vmatprep.subr.mxu0 0.0
        %1212 = vmatpush1.msra.mxu0 %v362
        %1213 = vmatprep.subr.mxu0 0.0
        %1214 = vmatpush1.msra.mxu0 %v363
        %1215 = vmatprep.subr.mxu0 0.0
        %1216 = vmatpush1.msra.mxu0 %v364
        %1217 = vmatprep.subr.mxu0 0.0
        %1218 = vmatpush1.msra.mxu0 %v365
        %1219 = vmatprep.subr.mxu0 0.0
        %1220 = vmatpush1.msra.mxu0 %v366
        %1221 = vmatprep.subr.mxu0 0.0
        %1222 = vmatpush1.msra.mxu0 %v367
        %1223 = vmatprep.subr.mxu0 0.0
        %1224 = vmatpush1.msra.mxu0 %v368
        %1225 = vmatprep.subr.mxu0 0.0
        %1226 = vmatpush1.msra.mxu0 %v369
        %1227 = vmatprep.subr.mxu0 0.0
        %1228 = vmatpush1.msra.mxu0 %v370
        %1229 = vmatprep.subr.mxu0 0.0
        %1230 = vmatpush1.msra.mxu0 %v371
        %1231 = vmatprep.subr.mxu0 0.0
        %1232 = vmatpush1.msra.mxu0 %v372
        %1233 = vmatprep.subr.mxu0 0.0
        %1234 = vmatpush1.msra.mxu0 %v373
        %1235 = vmatprep.subr.mxu0 0.0
        %1236 = vmatpush1.msra.mxu0 %v374
        %1237 = vmatprep.subr.mxu0 0.0
        %1238 = vmatpush1.msra.mxu0 %v375
        %1239 = vmatprep.subr.mxu0 0.0
        %1240 = vmatpush1.msra.mxu0 %v376
        %1241 = vmatprep.subr.mxu0 0.0
        %1242 = vmatpush1.msra.mxu0 %v377
        %1243 = vmatprep.subr.mxu0 0.0
        %1244 = vmatpush1.msra.mxu0 0.0
        %1245 = vmatprep.subr.mxu0 0.0
        %1246 = vmatpush1.msra.mxu0 0.0
        %1247 = vmatprep.subr.mxu0 0.0
        %1248 = vmatpush1.msra.mxu0 0.0
        %1249 = vmatprep.subr.mxu0 0.0
        %1250 = vmatpush1.msra.mxu0 0.0
        %1251 = vmatprep.subr.mxu0 0.0
        %1252 = vmatpush1.msra.mxu0 0.0
        %1253 = vmatprep.subr.mxu0 0.0
        %1254 = vmatpush1.msra.mxu0 0.0
        %1255 = vmatprep.subr.mxu0 0.0
        %1256 = vmatpush1.msra.mxu0 0.0
        %1257 = vmatprep.subr.mxu0 0.0
        %1258 = vmatpush1.msra.mxu0 0.0
        %1259 = vmatprep.subr.mxu0 0.0
        %1260 = vmatpush1.msra.mxu0 0.0
        %1261 = vmatprep.subr.mxu0 0.0
        %1262 = vmatpush1.msra.mxu0 0.0
        %1263 = vmatprep.subr.mxu0 0.0
        %1264 = vmatpush1.msra.mxu0 0.0
        %1265 = vmatprep.subr.mxu0 0.0
        %1266 = vmatpush1.msra.mxu0 0.0
        %1267 = vmatprep.subr.mxu0 0.0
        %1268 = vmatpush1.msra.mxu0 0.0
        %1269 = vmatprep.subr.mxu0 0.0
        %1270 = vmatpush1.msra.mxu0 0.0
        %1271 = vmatprep.subr.mxu0 0.0
        %1272 = vmatpush1.msra.mxu0 0.0
        %1273 = vmatprep.subr.mxu0 0.0
        %1274 = vmatpush1.msra.mxu0 0.0
        %1275 = vmatprep.mubr.f32.mxu0 0.0
        %1276 = vmatmul.mubr.f32.gmra.mrb[0].mxu0 %v1206
        %v1277 = vpop.f32.mrb[0].mxu0
        %v1278 = vadd.f32 %v1210, %v1277
        %v1279 = vpop.f32.mrb[0].mxu0
        %1280 = vdwg.mxu0
        %v1281 = vmul.f32 %v1278, %v1278
        %1282 = vadd.xlane.f32.xlu0 %v1281
        %v1283 = vpop.xlane.xlu0 %1282
        %v1284 = vmax.f32 %v1283, 1e-24
        %v1285 = vrsqrt.pop %v1284
        %v1286 = vmul.f32 %v1278, %v1285
        %1287 = vmatprep.subr.mxu0 0.0
        %1288 = vmatpush1.xpose.msra.mxu0 %v1099
        %1289 = vmatprep.subr.mxu0 0.0
        %1290 = vmatpush1.xpose.msra.mxu0 %v1100
        %1291 = vmatprep.subr.mxu0 0.0
        %1292 = vmatpush1.xpose.msra.mxu0 %v1101
        %1293 = vmatprep.subr.mxu0 0.0
        %1294 = vmatpush1.xpose.msra.mxu0 %v1102
        %1295 = vmatprep.subr.mxu0 0.0
        %1296 = vmatpush1.xpose.msra.mxu0 %v1103
        %1297 = vmatprep.subr.mxu0 0.0
        %1298 = vmatpush1.xpose.msra.mxu0 %v1104
        %1299 = vmatprep.subr.mxu0 0.0
        %1300 = vmatpush1.xpose.msra.mxu0 %v1105
        %1301 = vmatprep.subr.mxu0 0.0
        %1302 = vmatpush1.xpose.msra.mxu0 %v1106
        %1303 = vmatprep.subr.mxu0 0.0
        %1304 = vmatpush1.xpose.msra.mxu0 %v1107
        %1305 = vmatprep.subr.mxu0 0.0
        %1306 = vmatpush1.xpose.msra.mxu0 %v1108
        %1307 = vmatprep.subr.mxu0 0.0
        %1308 = vmatpush1.xpose.msra.mxu0 %v1109
        %1309 = vmatprep.subr.mxu0 0.0
        %1310 = vmatpush1.xpose.msra.mxu0 %v1110
        %1311 = vmatprep.subr.mxu0 0.0
        %1312 = vmatpush1.xpose.msra.mxu0 %v1111
        %1313 = vmatprep.subr.mxu0 0.0
        %1314 = vmatpush1.xpose.msra.mxu0 %v1112
        %1315 = vmatprep.subr.mxu0 0.0
        %1316 = vmatpush1.xpose.msra.mxu0 %v1113
        %1317 = vmatprep.subr.mxu0 0.0
        %1318 = vmatpush1.xpose.msra.mxu0 %v1114
        %1319 = vmatprep.subr.mxu0 0.0
        %1320 = vmatpush1.xpose.msra.mxu0 0.0
        %1321 = vmatprep.subr.mxu0 0.0
        %1322 = vmatpush1.xpose.msra.mxu0 0.0
        %1323 = vmatprep.subr.mxu0 0.0
        %1324 = vmatpush1.xpose.msra.mxu0 0.0
        %1325 = vmatprep.subr.mxu0 0.0
        %1326 = vmatpush1.xpose.msra.mxu0 0.0
        %1327 = vmatprep.subr.mxu0 0.0
        %1328 = vmatpush1.xpose.msra.mxu0 0.0
        %1329 = vmatprep.subr.mxu0 0.0
        %1330 = vmatpush1.xpose.msra.mxu0 0.0
        %1331 = vmatprep.subr.mxu0 0.0
        %1332 = vmatpush1.xpose.msra.mxu0 0.0
        %1333 = vmatprep.subr.mxu0 0.0
        %1334 = vmatpush1.xpose.msra.mxu0 0.0
        %1335 = vmatprep.subr.mxu0 0.0
        %1336 = vmatpush1.xpose.msra.mxu0 0.0
        %1337 = vmatprep.subr.mxu0 0.0
        %1338 = vmatpush1.xpose.msra.mxu0 0.0
        %1339 = vmatprep.subr.mxu0 0.0
        %1340 = vmatpush1.xpose.msra.mxu0 0.0
        %1341 = vmatprep.subr.mxu0 0.0
        %1342 = vmatpush1.xpose.msra.mxu0 0.0
        %1343 = vmatprep.subr.mxu0 0.0
        %1344 = vmatpush1.xpose.msra.mxu0 0.0
        %1345 = vmatprep.subr.mxu0 0.0
        %1346 = vmatpush1.xpose.msra.mxu0 0.0
        %1347 = vmatprep.subr.mxu0 0.0
        %1348 = vmatpush1.xpose.msra.mxu0 0.0
        %1349 = vmatprep.subr.mxu0 0.0
        %1350 = vmatpush1.xpose.msra.mxu0 0.0
        %1351 = vmatprep.mubr.f32.mxu0 0.0
        %1352 = vmatmul.mubr.f32.gmra.mrb[0].mxu0 %v1286
        %v1353 = vpop.f32.mrb[0].mxu0
        %v1354 = vadd.f32 0.0, %v1353
        %v1355 = vpop.f32.mrb[0].mxu0
        %1356 = vdwg.mxu0
        %v1357 = vld [vmem:[%s322] sm:$0x1]
        %vm1358 = vcmp.ne.s32.totalorder %v1357, 4294967295
        %v1359 = vsel %vm1358, 1, 0
        %v1360 = vlaneseq
        %v1361 = vshrl.u32 %v1360, 7
        %v1362 = vsub.s32 0, %v1361
        %v1363 = vrot.slane %v1359, %v1362
        %vm1364 = vcmp.eq.s32.totalorder %v1363, 1
        %v1365 = vsel %vm1364, %v1354, -1.0
        %1366 = vst [vmem:[%s310] sm:$0xff] %v1365
        %s1367 = sand.u32 %s192, 1
        %s1368 = scalar_lea.sflag [#allocation4], %s1367
        %s1369 = sand.u32 %s192, 1
        %s1370 = smul.addr %s1369, 8
        %s1371 = scalar_lea.vmem [#allocation5], %s1370
        // Predicated region
        $region53: #{tpu_custom_call.1} parent=47 // pred_check
          %p1372 = pneg %p202
        $region54: #{tpu_custom_call.1} parent=47 // pred_check_branch
          %1374 = sbr.rel (%p1372) target = $region56
        $region55: #{tpu_custom_call.1} parent=47 // pred_region
          %s1376 = ssub.s32 128, 128
          %1377 = vsyncadd %s1368, %s1376
          %s1378 = smul.addr %s22, 128
          %s1379 = scalar_lea.hbm %s7, %s1378
          %s1381 = sshll.u32 %s1371, 4
          %s1382 = int_to_ptr.vmem [resolvable:$true] %s1381
          %1384 = dma.vmem_to_hbm [thread:$0]  %s1382, 128, %s1379, %s1368
        $region56: #{tpu_custom_call.1} parent=47 // pred_fallthru
          _
      $region48: #{tpu_custom_call.1} parent=5 // pred_fallthru
        _
      %p1385 = scmp.le.s32.totalorder 2, %s17
      // Predicated region
      $region57: #{tpu_custom_call.1} parent=5 // pred_check
        %p1386 = pneg %p1385
      $region58: #{tpu_custom_call.1} parent=5 // pred_check_branch
        %1388 = sbr.rel (%p1386) target = $region60
      $region59: #{tpu_custom_call.1} parent=5 // pred_region
        %s1389 = ssub.s32 %s17, 2
        // Predicated region
        $region61: #{tpu_custom_call.1} parent=59 // pred_check
          %p1390 = pneg %p208
        $region62: #{tpu_custom_call.1} parent=59 // pred_check_branch
          %1392 = sbr.rel (%p1390) target = $region64
        $region63: #{tpu_custom_call.1} parent=59 // pred_region
          %s1393 = sand.u32 %s193, 1
          %s1394 = scalar_lea.sflag [#allocation4], %s1393
          %s1395 = sand.u32 %s193, 1
          %s1396 = smul.addr %s1395, 8
          %s1397 = scalar_lea.vmem [#allocation5], %s1396
          %1398 = dma.done %s1394, 128
        $region64: #{tpu_custom_call.1} parent=59 // pred_fallthru
          _
      $region60: #{tpu_custom_call.1} parent=5 // pred_fallthru
        _
    $region6: #{tpu_custom_call.1} parent=1 // loop_footer
      %s21 = sadd.s32 1, %s17
    $region7: #{tpu_custom_call.1} parent=1 // loop_footer_branch
      %16 = sbr.rel target = $region3
    $region8: #{tpu_custom_call.1} parent=1 // loop_exit
      _
    %1399 = vsyncpa [#allocation3], 1
    %s1400 = scalar_lea.sflag [#allocation3], 1
    %1401 = vsyncpa %s1400, 1
    %1402 = vsyncpa [#allocation4], 1
    %s1403 = scalar_lea.sflag [#allocation4], 1
    %1404 = vsyncpa %s1403, 1

</llo_original>
